<compile_context>
chip_gen: v7x
topology: tpu7x:2x2x1
jax: 0.10.0
libtpu: 0.0.40
codegen_flags: <defaults>
</compile_context>

<pallas_src>
import functools

import jax
import jax.numpy as jnp
from jax.experimental import pallas as pl
from jax.experimental.pallas import tpu as pltpu

FP_DIM = {"ecfp": 64, "maccs": 32}


def _round_up(x, m):
    return ((x + m - 1) // m) * m


# ------------------------------------------------------------------
# Fused kernel: for each row tile, loop over knowledge-fusion layers.
#   gi = onehot @ k_gates            (k_gates precomputed per graph, per layer)
#   gh = h @ W_h                     (done per gate, lane-aligned D_pad slabs)
#   r  = sigmoid(gi_r + gh_r)
#   z  = sigmoid(gi_z + gh_z)
#   n  = tanh(gi_n + r * (gh_n + b_hn))
#   h' = (1 - z) * n + z * h
# ------------------------------------------------------------------
def _gru_fusion_kernel(*refs, num_layers):
    gid_ref, h_ref = refs[0], refs[1]
    o_ref = refs[-1]
    layer_refs = refs[2:-1]                     # 3 refs per layer: k_gates, W_h, b_hn

    d = o_ref.shape[-1]                         # D_pad (multiple of 128)
    tn = o_ref.shape[0]                         # row tile
    g = layer_refs[0].shape[0]                  # padded number of graphs

    # dgl.broadcast_nodes gather expressed as an exact 0/1 one-hot matmul on the MXU.
    # Same batched graph for every layer -> build once per tile.
    gid = gid_ref[...]                                                   # [tn, 1] int32
    onehot_b = gid == jax.lax.broadcasted_iota(jnp.int32, (tn, g), 1)    # [tn, G] bool

    h = h_ref[...].astype(jnp.float32)          # h row tile stays resident across layers

    for l in range(num_layers):                 # static: unrolled at trace time
        kg_ref, wh_ref, bhn_ref = layer_refs[3 * l:3 * l + 3]
        oh = onehot_b.astype(kg_ref.dtype)
        h_mx = h.astype(wh_ref.dtype)           # bf16 only feeds the MXU; epilogue is f32

        # Per-gate slabs are sliced at D_pad (=k*128) boundaries -> lane-aligned loads.
        gi_r = jnp.dot(oh, kg_ref[:, 0:d], preferred_element_type=jnp.float32)
        gh_r = jnp.dot(h_mx, wh_ref[:, 0:d], preferred_element_type=jnp.float32)
        r = jax.nn.sigmoid(gi_r + gh_r)

        gi_z = jnp.dot(oh, kg_ref[:, d:2 * d], preferred_element_type=jnp.float32)
        gh_z = jnp.dot(h_mx, wh_ref[:, d:2 * d], preferred_element_type=jnp.float32)
        z = jax.nn.sigmoid(gi_z + gh_z)

        gi_n = jnp.dot(oh, kg_ref[:, 2 * d:3 * d], preferred_element_type=jnp.float32)
        gh_n = jnp.dot(h_mx, wh_ref[:, 2 * d:3 * d], preferred_element_type=jnp.float32)
        n = jnp.tanh(gi_n + r * (gh_n + bhn_ref[...]))

        h = (1.0 - z) * n + z * h

    o_ref[...] = h.astype(o_ref.dtype)


# ------------------------------------------------------------------
# One-time parameter preparation (hoisted out of the hot path)
# ------------------------------------------------------------------
def init_params(key, d_model, knodes):
    """Deterministic init mirroring nn.Linear / nn.GRUCell shapes (PyTorch layout)."""
    params = []
    k = 1.0 / jnp.sqrt(jnp.asarray(d_model, jnp.float32))
    for fp_name in knodes:
        key, *ks = jax.random.split(key, 6)
        fp_dim = FP_DIM[fp_name]
        params.append(
            dict(
                # nn.Linear(fp_dim, d_model, bias=False): weight [d_model, fp_dim]
                w_proj=jax.random.uniform(ks[0], (d_model, fp_dim), jnp.float32, -k, k),
                # nn.GRUCell(d_model, d_model)
                w_ih=jax.random.uniform(ks[1], (3 * d_model, d_model), jnp.float32, -k, k),
                w_hh=jax.random.uniform(ks[2], (3 * d_model, d_model), jnp.float32, -k, k),
                b_ih=jax.random.uniform(ks[3], (3 * d_model,), jnp.float32, -k, k),
                b_hh=jax.random.uniform(ks[4], (3 * d_model,), jnp.float32, -k, k),
            )
        )
    return params


def prepare_params(raw_params, d_model, *, weight_dtype=jnp.float32, d_pad_multiple=128):
    """Transpose / concatenate / pad weights once into kernel-ready layout.

    W_proj^T / W_i / bias_i stay f32: they are only used in the (tiny) wrapper-side
    k_gates precompute.  Only W_h is kernel-resident and gets weight_dtype.
    """
    D = d_model
    D_pad = _round_up(D, d_pad_multiple)        # lane-dense last dim
    prepped = []

    def gates_concat(w):                        # w: [3D, D] (PyTorch) -> [D_pad, 3*D_pad]
        out = jnp.zeros((D_pad, 3 * D_pad), jnp.float32)
        for g, wg in enumerate(jnp.split(w, 3, axis=0)):
            out = out.at[:D, g * D_pad:g * D_pad + D].set(wg.T)
        return out

    for p in raw_params:
        F = p["w_proj"].shape[1]
        w_proj_t = jnp.zeros((F, D_pad), jnp.float32).at[:, :D].set(p["w_proj"].T)
        w_i = gates_concat(p["w_ih"])
        w_h = gates_concat(p["w_hh"])

        b_ir, b_iz, b_in_ = jnp.split(p["b_ih"], 3)
        b_hr, b_hz, b_hn = jnp.split(p["b_hh"], 3)
        bias_i = jnp.zeros((1, 3 * D_pad), jnp.float32)
        bias_i = bias_i.at[0, 0 * D_pad:0 * D_pad + D].set(b_ir + b_hr)
        bias_i = bias_i.at[0, 1 * D_pad:1 * D_pad + D].set(b_iz + b_hz)
        bias_i = bias_i.at[0, 2 * D_pad:2 * D_pad + D].set(b_in_)
        bias_hn = jnp.zeros((1, D_pad), jnp.float32).at[0, :D].set(b_hn)

        prepped.append(dict(
            w_proj_t=w_proj_t,                       # f32, wrapper-side only
            w_i=w_i,                                 # f32, wrapper-side only
            bias_i=bias_i,                           # f32, wrapper-side only
            w_h=w_h.astype(weight_dtype),            # kernel-resident (MXU input)
            bias_hn=bias_hn,                         # f32 (added in f32 epilogue)
            d_pad=D_pad,
        ))
    return prepped


# ------------------------------------------------------------------
# GRUFusion forward (single fused pallas_call over all knowledge sources)
# ------------------------------------------------------------------
def gru_fusion_forward(prepped, knode_names, graph_ids, x, knodes_dict, *, max_tile_n=256):
    """graph_ids: [N] int32 mapping each node to its graph (the `bg` batching info).

    Note: to halve HBM traffic further when the surrounding model runs bf16
    activations, pass x (and read the result) in bf16 — the in-kernel gate math
    stays f32 either way.
    """
    if len(knodes_dict) == 0:
        return x
    n, d = x.shape
    d_pad = prepped[0]["d_pad"]
    num_layers = len(knode_names)

    # Row tiling with bounded padding waste: padded rows never exceed ~one tile.
    num_tiles = -(-n // max_tile_n)
    tile_n = _round_up(-(-n // num_tiles), 8)
    n_pad = num_tiles * tile_n

    # Pad activations ONCE.  Padded rows carry gid=0 (they reuse graph 0's knowledge
    # vector) and padded cols stay zero — both are inert because we slice [:n, :d].
    h = jnp.zeros((n_pad, d_pad), x.dtype).at[:n, :d].set(x)

    g = next(iter(knodes_dict.values())).shape[0]
    g_pad = _round_up(g, 8)
    # Clamp ids to [0, G) to match jnp.take's clipping in the reference path.
    gid = jnp.clip(graph_ids.astype(jnp.int32), 0, g - 1)
    gid2d = jnp.zeros((n_pad, 1), jnp.int32).at[:n, 0].set(gid)

    # Per-layer k_gates = (kf @ Wp^T) @ W_i + combined input-side biases.
    # Tiny [G, F]@[F, D]@[D, 3D] matmuls, done once per forward in plain XLA (f32).
    layer_args = []
    in_specs = [
        pl.BlockSpec((tile_n, 1), lambda i: (i, 0)),        # graph ids per node
        pl.BlockSpec((tile_n, d_pad), lambda i: (i, 0)),    # hidden state h
    ]
    const = lambda i: (0, 0)
    for p, fp_name in zip(prepped, knode_names):
        kf = knodes_dict[fp_name].astype(jnp.float32)                       # [G, F]
        assert kf.shape[0] == g, "all knowledge sources must share the batched graph"
        k_gates = (kf @ p["w_proj_t"]) @ p["w_i"] + p["bias_i"]             # [G, 3*D_pad]
        k_gates = (jnp.zeros((g_pad, 3 * d_pad), jnp.float32)
                   .at[:g].set(k_gates).astype(p["w_h"].dtype))
        layer_args += [k_gates, p["w_h"], p["bias_hn"]]
        in_specs += [
            pl.BlockSpec((g_pad, 3 * d_pad), const),        # per-graph gate pre-activations
            pl.BlockSpec((d_pad, 3 * d_pad), const),        # W_h (gates concatenated)
            pl.BlockSpec((1, d_pad), const),                # b_hn
        ]

    # Explicit VMEM budget (estimate + headroom), kept within every generation's limit.
    w_itemsize = jnp.dtype(prepped[0]["w_h"].dtype).itemsize
    a_itemsize = jnp.dtype(h.dtype).itemsize
    weight_bytes = num_layers * ((g_pad + d_pad) * 3 * d_pad * w_itemsize + d_pad * 4)
    act_bytes = 2 * 2 * tile_n * d_pad * a_itemsize + 2 * tile_n * 4        # double-buffered tiles
    live_bytes = 8 * tile_n * d_pad * 4                                     # f32 intermediates
    vmem_limit = int(min(96 << 20,
                         max(32 << 20,
                             2 * weight_bytes + act_bytes + live_bytes + (8 << 20))))

    out = pl.pallas_call(
        functools.partial(_gru_fusion_kernel, num_layers=num_layers),
        out_shape=jax.ShapeDtypeStruct((n_pad, d_pad), h.dtype),
        grid=(n_pad // tile_n,),
        in_specs=in_specs,
        out_specs=pl.BlockSpec((tile_n, d_pad), lambda i: (i, 0)),
        compiler_params=pltpu.CompilerParams(
            dimension_semantics=("parallel",),
            vmem_limit_bytes=vmem_limit),
    )(gid2d, h, *layer_args)
    return out[:n, :d]


# ------------------------------------------------------------------
# Pure-JAX reference (PyTorch semantics, raw parameter layout)
# ------------------------------------------------------------------
def _gru_cell_ref(x, h, w_ih, w_hh, b_ih, b_hh):
    gi = x @ w_ih.T + b_ih
    gh = h @ w_hh.T + b_hh
    ir, iz, in_ = jnp.split(gi, 3, axis=1)
    hr, hz, hn = jnp.split(gh, 3, axis=1)
    r = jax.nn.sigmoid(ir + hr)
    z = jax.nn.sigmoid(iz + hz)
    n = jnp.tanh(in_ + r * hn)
    return (1.0 - z) * n + z * h


def _forward_ref(raw_params, knode_names, graph_ids, x, knodes_dict):
    if len(knodes_dict) == 0:
        return x
    for p, fp_name in zip(raw_params, knode_names):
        kp = knodes_dict[fp_name] @ p["w_proj"].T
        kb = jnp.take(kp, graph_ids, axis=0)
        x = _gru_cell_ref(kb, x, p["w_ih"], p["w_hh"], p["b_ih"], p["b_hh"])
    return x


if __name__ == "__main__":
    d_model = 32
    knode_names = ["ecfp", "maccs"]
    num_graphs = 2
    # batched graph: 10 nodes in graph 0, 6 nodes in graph 1 -> N = 16
    graph_ids = jnp.asarray([0] * 10 + [1] * 6, dtype=jnp.int32)
    N = graph_ids.shape[0]

    key = jax.random.PRNGKey(0)
    key, kx, k1, k2, kp = jax.random.split(key, 5)
    x = jax.random.normal(kx, (N, d_model), jnp.float32)
    knodes_dict = {
        "ecfp": jax.random.normal(k1, (num_graphs, FP_DIM["ecfp"]), jnp.float32),
        "maccs": jax.random.normal(k2, (num_graphs, FP_DIM["maccs"]), jnp.float32),
    }

    raw_params = init_params(kp, d_model, knode_names)
    prepped = prepare_params(raw_params, d_model)       # one-time, outside the hot path

    out = gru_fusion_forward(prepped, knode_names, graph_ids, x, knodes_dict)
    out = jax.block_until_ready(out)

    ref = _forward_ref(raw_params, knode_names, graph_ids, x, knodes_dict)
    assert out.shape == (N, d_model)
    assert jnp.allclose(out, ref, atol=5e-5, rtol=5e-5), "mismatch vs reference"

    print("KERNEL_OK")
</pallas_src>

<mosaic_0001>
module attributes {stable_mosaic.version = 11 : i64} {
  func.func @_gru_fusion_kernel(%arg0: i32, %arg1: memref<16x1xi32, #tpu.memory_space<vmem>>, %arg2: memref<16x128xf32, #tpu.memory_space<vmem>>, %arg3: memref<8x384xf32, #tpu.memory_space<vmem>>, %arg4: memref<128x384xf32, #tpu.memory_space<vmem>>, %arg5: memref<1x128xf32, #tpu.memory_space<vmem>>, %arg6: memref<8x384xf32, #tpu.memory_space<vmem>>, %arg7: memref<128x384xf32, #tpu.memory_space<vmem>>, %arg8: memref<1x128xf32, #tpu.memory_space<vmem>>, %arg9: memref<16x128xf32, #tpu.memory_space<vmem>>) attributes {dimension_semantics = [#tpu.dimension_semantics<parallel>], iteration_bounds = array<i64: 1>, scalar_prefetch = 0 : i64, scratch_operands = 0 : i64, tpu.core_type = #tpu.core_type<tc>, window_params = [{transform_indices = @transform_0, window_bounds = array<i64: 16, 1>}, {transform_indices = @transform_1, window_bounds = array<i64: 16, 128>}, {pipeline_mode = #tpu.pipeline_mode<synchronous>, transform_indices = @transform_2, window_bounds = array<i64: 8, 384>}, {pipeline_mode = #tpu.pipeline_mode<synchronous>, transform_indices = @transform_3, window_bounds = array<i64: 128, 384>}, {pipeline_mode = #tpu.pipeline_mode<synchronous>, transform_indices = @transform_4, window_bounds = array<i64: 1, 128>}, {pipeline_mode = #tpu.pipeline_mode<synchronous>, transform_indices = @transform_5, window_bounds = array<i64: 8, 384>}, {pipeline_mode = #tpu.pipeline_mode<synchronous>, transform_indices = @transform_6, window_bounds = array<i64: 128, 384>}, {pipeline_mode = #tpu.pipeline_mode<synchronous>, transform_indices = @transform_7, window_bounds = array<i64: 1, 128>}, {transform_indices = @transform_8, window_bounds = array<i64: 16, 128>}]} {
    %c0 = arith.constant 0 : index
    %c0_0 = arith.constant 0 : index
    %0 = vector.load %arg1[%c0, %c0_0] : memref<16x1xi32, #tpu.memory_space<vmem>>, vector<16x1xi32>
    %1 = tpu.iota {dimensions = array<i32: 1>} : vector<16x8xi32>
    %2 = vector.broadcast %0 : vector<16x1xi32> to vector<16x8xi32>
    %3 = arith.cmpi eq, %2, %1 : vector<16x8xi32>
    %c0_1 = arith.constant 0 : index
    %c0_2 = arith.constant 0 : index
    %4 = vector.load %arg2[%c0_1, %c0_2] : memref<16x128xf32, #tpu.memory_space<vmem>>, vector<16x128xf32>
    %5 = arith.extui %3 : vector<16x8xi1> to vector<16x8xi32>
    %6 = arith.sitofp %5 : vector<16x8xi32> to vector<16x8xf32>
    %c0_3 = arith.constant 0 : index
    %c0_4 = arith.constant 0 : index
    %7 = vector.load %arg3[%c0_3, %c0_4] : memref<8x384xf32, #tpu.memory_space<vmem>>, vector<8x128xf32>
    %cst = arith.constant dense<0.000000e+00> : vector<16x128xf32>
    %8 = tpu.matmul %6, %7, %cst {dimension_numbers = #tpu.dot_dimension_numbers<[1], [0], [0], [1], [0, 0, 1, 1], [], []>} : vector<16x8xf32>, vector<8x128xf32>, vector<16x128xf32> -> vector<16x128xf32>
    %c0_5 = arith.constant 0 : index
    %c0_6 = arith.constant 0 : index
    %9 = vector.load %arg4[%c0_5, %c0_6] : memref<128x384xf32, #tpu.memory_space<vmem>>, vector<128x128xf32>
    %cst_7 = arith.constant dense<0.000000e+00> : vector<16x128xf32>
    %10 = tpu.matmul %4, %9, %cst_7 {dimension_numbers = #tpu.dot_dimension_numbers<[1], [0], [0], [1], [0, 0, 1, 1], [], []>} : vector<16x128xf32>, vector<128x128xf32>, vector<16x128xf32> -> vector<16x128xf32>
    %11 = arith.addf %8, %10 : vector<16x128xf32>
    %12 = arith.negf %11 : vector<16x128xf32>
    %13 = math.exp %12 : vector<16x128xf32>
    %cst_8 = arith.constant 1.000000e+00 : f32
    %14 = vector.broadcast %cst_8 : f32 to vector<16x128xf32>
    %15 = arith.addf %14, %13 : vector<16x128xf32>
    %16 = arith.divf %14, %15 : vector<16x128xf32>
    %c0_9 = arith.constant 0 : index
    %c128 = arith.constant 128 : index
    %17 = vector.load %arg3[%c0_9, %c128] : memref<8x384xf32, #tpu.memory_space<vmem>>, vector<8x128xf32>
    %cst_10 = arith.constant dense<0.000000e+00> : vector<16x128xf32>
    %18 = tpu.matmul %6, %17, %cst_10 {dimension_numbers = #tpu.dot_dimension_numbers<[1], [0], [0], [1], [0, 0, 1, 1], [], []>} : vector<16x8xf32>, vector<8x128xf32>, vector<16x128xf32> -> vector<16x128xf32>
    %c0_11 = arith.constant 0 : index
    %c128_12 = arith.constant 128 : index
    %19 = vector.load %arg4[%c0_11, %c128_12] : memref<128x384xf32, #tpu.memory_space<vmem>>, vector<128x128xf32>
    %cst_13 = arith.constant dense<0.000000e+00> : vector<16x128xf32>
    %20 = tpu.matmul %4, %19, %cst_13 {dimension_numbers = #tpu.dot_dimension_numbers<[1], [0], [0], [1], [0, 0, 1, 1], [], []>} : vector<16x128xf32>, vector<128x128xf32>, vector<16x128xf32> -> vector<16x128xf32>
    %21 = arith.addf %18, %20 : vector<16x128xf32>
    %22 = arith.negf %21 : vector<16x128xf32>
    %23 = math.exp %22 : vector<16x128xf32>
    %cst_14 = arith.constant 1.000000e+00 : f32
    %24 = vector.broadcast %cst_14 : f32 to vector<16x128xf32>
    %25 = arith.addf %24, %23 : vector<16x128xf32>
    %26 = arith.divf %24, %25 : vector<16x128xf32>
    %c0_15 = arith.constant 0 : index
    %c256 = arith.constant 256 : index
    %27 = vector.load %arg3[%c0_15, %c256] : memref<8x384xf32, #tpu.memory_space<vmem>>, vector<8x128xf32>
    %cst_16 = arith.constant dense<0.000000e+00> : vector<16x128xf32>
    %28 = tpu.matmul %6, %27, %cst_16 {dimension_numbers = #tpu.dot_dimension_numbers<[1], [0], [0], [1], [0, 0, 1, 1], [], []>} : vector<16x8xf32>, vector<8x128xf32>, vector<16x128xf32> -> vector<16x128xf32>
    %c0_17 = arith.constant 0 : index
    %c256_18 = arith.constant 256 : index
    %29 = vector.load %arg4[%c0_17, %c256_18] : memref<128x384xf32, #tpu.memory_space<vmem>>, vector<128x128xf32>
    %cst_19 = arith.constant dense<0.000000e+00> : vector<16x128xf32>
    %30 = tpu.matmul %4, %29, %cst_19 {dimension_numbers = #tpu.dot_dimension_numbers<[1], [0], [0], [1], [0, 0, 1, 1], [], []>} : vector<16x128xf32>, vector<128x128xf32>, vector<16x128xf32> -> vector<16x128xf32>
    %c0_20 = arith.constant 0 : index
    %c0_21 = arith.constant 0 : index
    %31 = vector.load %arg5[%c0_20, %c0_21] : memref<1x128xf32, #tpu.memory_space<vmem>>, vector<1x128xf32>
    %32 = vector.broadcast %31 : vector<1x128xf32> to vector<16x128xf32>
    %33 = arith.addf %30, %32 : vector<16x128xf32>
    %34 = arith.mulf %16, %33 : vector<16x128xf32>
    %35 = arith.addf %28, %34 : vector<16x128xf32>
    %36 = math.tanh %35 : vector<16x128xf32>
    %cst_22 = arith.constant 1.000000e+00 : f32
    %37 = vector.broadcast %cst_22 : f32 to vector<16x128xf32>
    %38 = arith.subf %37, %26 : vector<16x128xf32>
    %39 = arith.mulf %38, %36 : vector<16x128xf32>
    %40 = arith.mulf %26, %4 : vector<16x128xf32>
    %41 = arith.addf %39, %40 : vector<16x128xf32>
    %42 = arith.extui %3 : vector<16x8xi1> to vector<16x8xi32>
    %43 = arith.sitofp %42 : vector<16x8xi32> to vector<16x8xf32>
    %c0_23 = arith.constant 0 : index
    %c0_24 = arith.constant 0 : index
    %44 = vector.load %arg6[%c0_23, %c0_24] : memref<8x384xf32, #tpu.memory_space<vmem>>, vector<8x128xf32>
    %cst_25 = arith.constant dense<0.000000e+00> : vector<16x128xf32>
    %45 = tpu.matmul %43, %44, %cst_25 {dimension_numbers = #tpu.dot_dimension_numbers<[1], [0], [0], [1], [0, 0, 1, 1], [], []>} : vector<16x8xf32>, vector<8x128xf32>, vector<16x128xf32> -> vector<16x128xf32>
    %c0_26 = arith.constant 0 : index
    %c0_27 = arith.constant 0 : index
    %46 = vector.load %arg7[%c0_26, %c0_27] : memref<128x384xf32, #tpu.memory_space<vmem>>, vector<128x128xf32>
    %cst_28 = arith.constant dense<0.000000e+00> : vector<16x128xf32>
    %47 = tpu.matmul %41, %46, %cst_28 {dimension_numbers = #tpu.dot_dimension_numbers<[1], [0], [0], [1], [0, 0, 1, 1], [], []>} : vector<16x128xf32>, vector<128x128xf32>, vector<16x128xf32> -> vector<16x128xf32>
    %48 = arith.addf %45, %47 : vector<16x128xf32>
    %49 = arith.negf %48 : vector<16x128xf32>
    %50 = math.exp %49 : vector<16x128xf32>
    %cst_29 = arith.constant 1.000000e+00 : f32
    %51 = vector.broadcast %cst_29 : f32 to vector<16x128xf32>
    %52 = arith.addf %51, %50 : vector<16x128xf32>
    %53 = arith.divf %51, %52 : vector<16x128xf32>
    %c0_30 = arith.constant 0 : index
    %c128_31 = arith.constant 128 : index
    %54 = vector.load %arg6[%c0_30, %c128_31] : memref<8x384xf32, #tpu.memory_space<vmem>>, vector<8x128xf32>
    %cst_32 = arith.constant dense<0.000000e+00> : vector<16x128xf32>
    %55 = tpu.matmul %43, %54, %cst_32 {dimension_numbers = #tpu.dot_dimension_numbers<[1], [0], [0], [1], [0, 0, 1, 1], [], []>} : vector<16x8xf32>, vector<8x128xf32>, vector<16x128xf32> -> vector<16x128xf32>
    %c0_33 = arith.constant 0 : index
    %c128_34 = arith.constant 128 : index
    %56 = vector.load %arg7[%c0_33, %c128_34] : memref<128x384xf32, #tpu.memory_space<vmem>>, vector<128x128xf32>
    %cst_35 = arith.constant dense<0.000000e+00> : vector<16x128xf32>
    %57 = tpu.matmul %41, %56, %cst_35 {dimension_numbers = #tpu.dot_dimension_numbers<[1], [0], [0], [1], [0, 0, 1, 1], [], []>} : vector<16x128xf32>, vector<128x128xf32>, vector<16x128xf32> -> vector<16x128xf32>
    %58 = arith.addf %55, %57 : vector<16x128xf32>
    %59 = arith.negf %58 : vector<16x128xf32>
    %60 = math.exp %59 : vector<16x128xf32>
    %cst_36 = arith.constant 1.000000e+00 : f32
    %61 = vector.broadcast %cst_36 : f32 to vector<16x128xf32>
    %62 = arith.addf %61, %60 : vector<16x128xf32>
    %63 = arith.divf %61, %62 : vector<16x128xf32>
    %c0_37 = arith.constant 0 : index
    %c256_38 = arith.constant 256 : index
    %64 = vector.load %arg6[%c0_37, %c256_38] : memref<8x384xf32, #tpu.memory_space<vmem>>, vector<8x128xf32>
    %cst_39 = arith.constant dense<0.000000e+00> : vector<16x128xf32>
    %65 = tpu.matmul %43, %64, %cst_39 {dimension_numbers = #tpu.dot_dimension_numbers<[1], [0], [0], [1], [0, 0, 1, 1], [], []>} : vector<16x8xf32>, vector<8x128xf32>, vector<16x128xf32> -> vector<16x128xf32>
    %c0_40 = arith.constant 0 : index
    %c256_41 = arith.constant 256 : index
    %66 = vector.load %arg7[%c0_40, %c256_41] : memref<128x384xf32, #tpu.memory_space<vmem>>, vector<128x128xf32>
    %cst_42 = arith.constant dense<0.000000e+00> : vector<16x128xf32>
    %67 = tpu.matmul %41, %66, %cst_42 {dimension_numbers = #tpu.dot_dimension_numbers<[1], [0], [0], [1], [0, 0, 1, 1], [], []>} : vector<16x128xf32>, vector<128x128xf32>, vector<16x128xf32> -> vector<16x128xf32>
    %c0_43 = arith.constant 0 : index
    %c0_44 = arith.constant 0 : index
    %68 = vector.load %arg8[%c0_43, %c0_44] : memref<1x128xf32, #tpu.memory_space<vmem>>, vector<1x128xf32>
    %69 = vector.broadcast %68 : vector<1x128xf32> to vector<16x128xf32>
    %70 = arith.addf %67, %69 : vector<16x128xf32>
    %71 = arith.mulf %53, %70 : vector<16x128xf32>
    %72 = arith.addf %65, %71 : vector<16x128xf32>
    %73 = math.tanh %72 : vector<16x128xf32>
    %cst_45 = arith.constant 1.000000e+00 : f32
    %74 = vector.broadcast %cst_45 : f32 to vector<16x128xf32>
    %75 = arith.subf %74, %63 : vector<16x128xf32>
    %76 = arith.mulf %75, %73 : vector<16x128xf32>
    %77 = arith.mulf %63, %41 : vector<16x128xf32>
    %78 = arith.addf %76, %77 : vector<16x128xf32>
    %c0_46 = arith.constant 0 : index
    %c0_47 = arith.constant 0 : index
    %79 = vector.load %arg9[%c0_46, %c0_47] : memref<16x128xf32, #tpu.memory_space<vmem>>, vector<16x128xf32>
    tpu.vector_store %arg9[%c0_46, %c0_47], %78 {strides = array<i32>} : memref<16x128xf32, #tpu.memory_space<vmem>>, vector<16x128xf32>,
    return
  }
  func.func @transform_0(%arg0: i32) -> (i32, i32) {
    %c0_i32 = arith.constant 0 : i32
    %c0_i32_0 = arith.constant 0 : i32
    return %arg0, %c0_i32 : i32, i32
  }
  func.func @transform_1(%arg0: i32) -> (i32, i32) {
    %c0_i32 = arith.constant 0 : i32
    %c0_i32_0 = arith.constant 0 : i32
    return %arg0, %c0_i32 : i32, i32
  }
  func.func @transform_2(%arg0: i32) -> (i32, i32) {
    %c0_i32 = arith.constant 0 : i32
    %c0_i32_0 = arith.constant 0 : i32
    %c0_i32_1 = arith.constant 0 : i32
    return %c0_i32, %c0_i32_0 : i32, i32
  }
  func.func @transform_3(%arg0: i32) -> (i32, i32) {
    %c0_i32 = arith.constant 0 : i32
    %c0_i32_0 = arith.constant 0 : i32
    %c0_i32_1 = arith.constant 0 : i32
    return %c0_i32, %c0_i32_0 : i32, i32
  }
  func.func @transform_4(%arg0: i32) -> (i32, i32) {
    %c0_i32 = arith.constant 0 : i32
    %c0_i32_0 = arith.constant 0 : i32
    %c0_i32_1 = arith.constant 0 : i32
    return %c0_i32, %c0_i32_0 : i32, i32
  }
  func.func @transform_5(%arg0: i32) -> (i32, i32) {
    %c0_i32 = arith.constant 0 : i32
    %c0_i32_0 = arith.constant 0 : i32
    %c0_i32_1 = arith.constant 0 : i32
    return %c0_i32, %c0_i32_0 : i32, i32
  }
  func.func @transform_6(%arg0: i32) -> (i32, i32) {
    %c0_i32 = arith.constant 0 : i32
    %c0_i32_0 = arith.constant 0 : i32
    %c0_i32_1 = arith.constant 0 : i32
    return %c0_i32, %c0_i32_0 : i32, i32
  }
  func.func @transform_7(%arg0: i32) -> (i32, i32) {
    %c0_i32 = arith.constant 0 : i32
    %c0_i32_0 = arith.constant 0 : i32
    %c0_i32_1 = arith.constant 0 : i32
    return %c0_i32, %c0_i32_0 : i32, i32
  }
  func.func @transform_8(%arg0: i32) -> (i32, i32) {
    %c0_i32 = arith.constant 0 : i32
    %c0_i32_0 = arith.constant 0 : i32
    return %arg0, %c0_i32 : i32, i32
  }
}

</mosaic_0001>

<llo_original>
// kernel: tpu_custom_call.1
$region0: #{tpu_custom_call.1}
  #allocation0 [shape = 'u32[]', space=smem, size = 0x4, offset = 0x4, fixed_abs, tag = 'smem constant byte address 0x4 - core index']
  #allocation1 [shape = 'u32[144,128]{1,0:T(1,128)}', space=vmem, size = 0x12000, scoped, tag = 'internal scratch']
  %s0 = inlined_call_operand.vmem [shape: s32[16,1], index: 0, kind: input, shape index: {}]
  %s1 = inlined_call_operand.hbm [shape: f32[16,128], index: 1, kind: input, shape index: {}]
  %s2 = inlined_call_operand.vmem [shape: f32[8,384], index: 2, kind: input, shape index: {}]
  %s3 = inlined_call_operand.hbm [shape: f32[128,384], index: 3, kind: input, shape index: {}]
  %s4 = inlined_call_operand.vmem [shape: f32[1,128], index: 4, kind: input, shape index: {}]
  %s5 = inlined_call_operand.hbm [shape: f32[8,384], index: 5, kind: input, shape index: {}]
  %s6 = inlined_call_operand.hbm [shape: f32[128,384], index: 6, kind: input, shape index: {}]
  %s7 = inlined_call_operand.vmem [shape: f32[1,128], index: 7, kind: input, shape index: {}]
  %s8 = inlined_call_operand.hbm [shape: f32[16,128], index: 8, kind: output, shape index: {}]
  %s9 = sld [smem:[#allocation0]]
  $region58: #{tpu_custom_call.1} parent=0
    _
  %s11 = ssub.s32 1, %s9
  %s12 = scalar_select 0, %s11, %s9
  $region1: #{tpu_custom_call.1} parent=0
    #allocation2 [shape = 'u8[8192]{0}', space=vmem, size = 0x2000, scoped, tag = 'input window, operand 1, single buffered']
    #allocation3 [shape = 's32[1]{0}', space=sflag, size = 0x4, scoped, tag = 'scoped memory for tpu_custom_call.1']
    #allocation4 [shape = 's32[1]{0}', space=sflag, size = 0x4, scoped, tag = 'scoped memory for tpu_custom_call.1']
    #allocation5 [shape = 'u8[196608]{0}', space=vmem, size = 0x30000, scoped, tag = 'input window, operand 3, single buffered']
    #allocation6 [shape = 's32[1]{0}', space=sflag, size = 0x4, scoped, tag = 'scoped memory for tpu_custom_call.1']
    #allocation7 [shape = 'u8[12288]{0}', space=vmem, size = 0x3000, scoped, tag = 'input window, operand 5, single buffered']
    #allocation8 [shape = 'u8[196608]{0}', space=vmem, size = 0x30000, scoped, tag = 'input window, operand 6, single buffered']
    #allocation9 [shape = 's32[1]{0}', space=sflag, size = 0x4, scoped, tag = 'scoped memory for tpu_custom_call.1']
    #allocation10 [shape = 'u8[8192]{0}', space=vmem, size = 0x2000, scoped, tag = 'output window, operand 0, single buffered']
    %13 = vsyncpa [#allocation3], 0
    %14 = vsyncpa [#allocation6], 0
    %15 = vsyncpa [#allocation9], 0
    %16 = vsyncpa [#allocation4], 0
    // Predicated region
    $region2: #{tpu_custom_call.1} parent=1 // pred_check
      _
    $region3: #{tpu_custom_call.1} parent=1 // pred_check_branch
      %18 = sbr.rel (0) target = $region5
    $region4: #{tpu_custom_call.1} parent=1 // pred_region
      _
    $region5: #{tpu_custom_call.1} parent=1 // pred_fallthru
      _
    // Predicated region
    $region6: #{tpu_custom_call.1} parent=1 // pred_check
      _
    $region7: #{tpu_custom_call.1} parent=1 // pred_check_branch
      %20 = sbr.rel (0) target = $region9
    $region8: #{tpu_custom_call.1} parent=1 // pred_region
      %s22 = ssub.s32 256, 256
      %23 = vsyncadd [#allocation3], %s22
      %s24 = sshll.u32 [#allocation2], 4
      %s25 = int_to_ptr.vmem [resolvable:$true] %s24
      %30 = dma.hbm_to_vmem [thread:$0]  %s1, 256, %s25, [#allocation3], 128, 128, 8
    $region9: #{tpu_custom_call.1} parent=1 // pred_fallthru
      _
    // Predicated region
    $region10: #{tpu_custom_call.1} parent=1 // pred_check
      _
    $region11: #{tpu_custom_call.1} parent=1 // pred_check_branch
      %32 = sbr.rel (0) target = $region13
    $region12: #{tpu_custom_call.1} parent=1 // pred_region
      _
    $region13: #{tpu_custom_call.1} parent=1 // pred_fallthru
      _
    // Predicated region
    $region14: #{tpu_custom_call.1} parent=1 // pred_check
      _
    $region15: #{tpu_custom_call.1} parent=1 // pred_check_branch
      %34 = sbr.rel (0) target = $region17
    $region16: #{tpu_custom_call.1} parent=1 // pred_region
      %s36 = ssub.s32 6144, 6144
      %37 = vsyncadd [#allocation6], %s36
      %s38 = sshll.u32 [#allocation5], 4
      %s39 = int_to_ptr.vmem [resolvable:$true] %s38
      %44 = dma.hbm_to_vmem [thread:$0]  %s3, 6144, %s39, [#allocation6], 384, 384, 24
    $region17: #{tpu_custom_call.1} parent=1 // pred_fallthru
      _
    // Predicated region
    $region18: #{tpu_custom_call.1} parent=1 // pred_check
      _
    $region19: #{tpu_custom_call.1} parent=1 // pred_check_branch
      %46 = sbr.rel (0) target = $region21
    $region20: #{tpu_custom_call.1} parent=1 // pred_region
      _
    $region21: #{tpu_custom_call.1} parent=1 // pred_fallthru
      _
    // Predicated region
    $region22: #{tpu_custom_call.1} parent=1 // pred_check
      _
    $region23: #{tpu_custom_call.1} parent=1 // pred_check_branch
      %48 = sbr.rel (0) target = $region25
    $region24: #{tpu_custom_call.1} parent=1 // pred_region
      %s50 = ssub.s32 384, 384
      %51 = vsyncadd [#allocation6], %s50
      %s53 = sshll.u32 [#allocation7], 4
      %s54 = int_to_ptr.vmem [resolvable:$true] %s53
      %56 = dma.hbm_to_vmem [thread:$0]  %s5, 384, %s54, [#allocation6]
    $region25: #{tpu_custom_call.1} parent=1 // pred_fallthru
      _
    // Predicated region
    $region26: #{tpu_custom_call.1} parent=1 // pred_check
      _
    $region27: #{tpu_custom_call.1} parent=1 // pred_check_branch
      %58 = sbr.rel (0) target = $region29
    $region28: #{tpu_custom_call.1} parent=1 // pred_region
      %s60 = ssub.s32 6144, 6144
      %61 = vsyncadd [#allocation9], %s60
      %s62 = sshll.u32 [#allocation8], 4
      %s63 = int_to_ptr.vmem [resolvable:$true] %s62
      %68 = dma.hbm_to_vmem [thread:$0]  %s6, 6144, %s63, [#allocation9], 384, 384, 24
    $region29: #{tpu_custom_call.1} parent=1 // pred_fallthru
      _
    // Predicated region
    $region30: #{tpu_custom_call.1} parent=1 // pred_check
      _
    $region31: #{tpu_custom_call.1} parent=1 // pred_check_branch
      %70 = sbr.rel (0) target = $region33
    $region32: #{tpu_custom_call.1} parent=1 // pred_region
      _
    $region33: #{tpu_custom_call.1} parent=1 // pred_fallthru
      _
    // Predicated region
    $region34: #{tpu_custom_call.1} parent=1 // pred_check
      _
    $region35: #{tpu_custom_call.1} parent=1 // pred_check_branch
      %72 = sbr.rel (0) target = $region37
    $region36: #{tpu_custom_call.1} parent=1 // pred_region
      %73 = dma.done [#allocation3], 256
    $region37: #{tpu_custom_call.1} parent=1 // pred_fallthru
      _
    // Predicated region
    $region38: #{tpu_custom_call.1} parent=1 // pred_check
      _
    $region39: #{tpu_custom_call.1} parent=1 // pred_check_branch
      %75 = sbr.rel (0) target = $region41
    $region40: #{tpu_custom_call.1} parent=1 // pred_region
      %76 = dma.done [#allocation6], 6144
    $region41: #{tpu_custom_call.1} parent=1 // pred_fallthru
      _
    // Predicated region
    $region42: #{tpu_custom_call.1} parent=1 // pred_check
      _
    $region43: #{tpu_custom_call.1} parent=1 // pred_check_branch
      %78 = sbr.rel (0) target = $region45
    $region44: #{tpu_custom_call.1} parent=1 // pred_region
      %79 = dma.done [#allocation6], 384
    $region45: #{tpu_custom_call.1} parent=1 // pred_fallthru
      _
    // Predicated region
    $region46: #{tpu_custom_call.1} parent=1 // pred_check
      _
    $region47: #{tpu_custom_call.1} parent=1 // pred_check_branch
      %81 = sbr.rel (0) target = $region49
    $region48: #{tpu_custom_call.1} parent=1 // pred_region
      %82 = dma.done [#allocation9], 6144
    $region49: #{tpu_custom_call.1} parent=1 // pred_fallthru
      _
    %v83 = vld [vmem:[%s0] sm:$0xff]
    %v84 = vld [vmem:[%s0 + $0x8] sm:$0xff]
    %v85 = vlaneseq
    %v86 = vand.u32 %v85, 127
    %87 = vset.pattern.permute.xlu0 0
    %88 = vperm.xlu0 %87, %v83
    %v89 = vpop.permute.xlu0 %88
    %90 = vset.pattern.permute.xlu0 0
    %91 = vperm.xlu0 %90, %v84
    %v92 = vpop.permute.xlu0 %91
    %vm93 = vcmp.eq.s32.totalorder %v89, %v86
    %vm94 = vcmp.eq.s32.totalorder %v92, %v86
    %v95 = vld [vmem:[#allocation2] sm:$0xff]
    %v96 = vld [vmem:[#allocation2 + $0x8] sm:$0xff]
    %v97 = vsel %vm93, 1, 0
    %v98 = vsel %vm94, 1, 0
    %v99 = vcvt.s32.f32 %v97
    %v100 = vcvt.s32.f32 %v98
    %v101 = vld [vmem:[%s2] sm:$0xff]
    %v102 = vld [vmem:[#allocation5] sm:$0xff]
    %v103 = vld [vmem:[#allocation5 + $0x18] sm:$0xff]
    %v104 = vld [vmem:[#allocation5 + $0x30] sm:$0xff]
    %v105 = vld [vmem:[#allocation5 + $0x48] sm:$0xff]
    %v106 = vld [vmem:[#allocation5 + $0x60] sm:$0xff]
    %v107 = vld [vmem:[#allocation5 + $0x78] sm:$0xff]
    %v108 = vld [vmem:[#allocation5 + $0x90] sm:$0xff]
    %v109 = vld [vmem:[#allocation5 + $0xa8] sm:$0xff]
    %v110 = vld [vmem:[#allocation5 + $0xc0] sm:$0xff]
    %v111 = vld [vmem:[#allocation5 + $0xd8] sm:$0xff]
    %v112 = vld [vmem:[#allocation5 + $0xf0] sm:$0xff]
    %v113 = vld [vmem:[#allocation5 + $0x108] sm:$0xff]
    %v114 = vld [vmem:[#allocation5 + $0x120] sm:$0xff]
    %v115 = vld [vmem:[#allocation5 + $0x138] sm:$0xff]
    %v116 = vld [vmem:[#allocation5 + $0x150] sm:$0xff]
    %v117 = vld [vmem:[#allocation5 + $0x168] sm:$0xff]
    %118 = vmatprep.subr.mxu0 0.0
    %119 = vmatpush1.msra.mxu0 %v102
    %120 = vmatprep.subr.mxu0 0.0
    %121 = vmatpush1.msra.mxu0 %v103
    %122 = vmatprep.subr.mxu0 0.0
    %123 = vmatpush1.msra.mxu0 %v104
    %124 = vmatprep.subr.mxu0 0.0
    %125 = vmatpush1.msra.mxu0 %v105
    %126 = vmatprep.subr.mxu0 0.0
    %127 = vmatpush1.msra.mxu0 %v106
    %128 = vmatprep.subr.mxu0 0.0
    %129 = vmatpush1.msra.mxu0 %v107
    %130 = vmatprep.subr.mxu0 0.0
    %131 = vmatpush1.msra.mxu0 %v108
    %132 = vmatprep.subr.mxu0 0.0
    %133 = vmatpush1.msra.mxu0 %v109
    %134 = vmatprep.subr.mxu0 0.0
    %135 = vmatpush1.msra.mxu0 %v110
    %136 = vmatprep.subr.mxu0 0.0
    %137 = vmatpush1.msra.mxu0 %v111
    %138 = vmatprep.subr.mxu0 0.0
    %139 = vmatpush1.msra.mxu0 %v112
    %140 = vmatprep.subr.mxu0 0.0
    %141 = vmatpush1.msra.mxu0 %v113
    %142 = vmatprep.subr.mxu0 0.0
    %143 = vmatpush1.msra.mxu0 %v114
    %144 = vmatprep.subr.mxu0 0.0
    %145 = vmatpush1.msra.mxu0 %v115
    %146 = vmatprep.subr.mxu0 0.0
    %147 = vmatpush1.msra.mxu0 %v116
    %148 = vmatprep.subr.mxu0 0.0
    %149 = vmatpush1.msra.mxu0 %v117
    %150 = vmatprep.subr.mxu0 0.0
    %151 = vmatpush1.msra.mxu0 0.0
    %152 = vmatprep.subr.mxu0 0.0
    %153 = vmatpush1.msra.mxu0 0.0
    %154 = vmatprep.subr.mxu0 0.0
    %155 = vmatpush1.msra.mxu0 0.0
    %156 = vmatprep.subr.mxu0 0.0
    %157 = vmatpush1.msra.mxu0 0.0
    %158 = vmatprep.subr.mxu0 0.0
    %159 = vmatpush1.msra.mxu0 0.0
    %160 = vmatprep.subr.mxu0 0.0
    %161 = vmatpush1.msra.mxu0 0.0
    %162 = vmatprep.subr.mxu0 0.0
    %163 = vmatpush1.msra.mxu0 0.0
    %164 = vmatprep.subr.mxu0 0.0
    %165 = vmatpush1.msra.mxu0 0.0
    %166 = vmatprep.subr.mxu0 0.0
    %167 = vmatpush1.msra.mxu0 0.0
    %168 = vmatprep.subr.mxu0 0.0
    %169 = vmatpush1.msra.mxu0 0.0
    %170 = vmatprep.subr.mxu0 0.0
    %171 = vmatpush1.msra.mxu0 0.0
    %172 = vmatprep.subr.mxu0 0.0
    %173 = vmatpush1.msra.mxu0 0.0
    %174 = vmatprep.subr.mxu0 0.0
    %175 = vmatpush1.msra.mxu0 0.0
    %176 = vmatprep.subr.mxu0 0.0
    %177 = vmatpush1.msra.mxu0 0.0
    %178 = vmatprep.subr.mxu0 0.0
    %179 = vmatpush1.msra.mxu0 0.0
    %180 = vmatprep.subr.mxu0 0.0
    %181 = vmatpush1.msra.mxu0 0.0
    %182 = vmatprep.mubr.f32.mxu0 0.0
    %183 = vmatmul.mubr.f32.gmra.mrb[0].mxu0 %v95
    %v184 = vpop.f32.mrb[0].mxu0
    %v185 = vadd.f32 0.0, %v184
    %v186 = vpop.f32.mrb[0].mxu0
    %187 = vmatprep.mubr.f32.mxu0 0.0
    %188 = vmatmul.mubr.f32.gmra.mrb[0].mxu0 %v96
    %v189 = vpop.f32.mrb[0].mxu0
    %v190 = vadd.f32 0.0, %v189
    %v191 = vpop.f32.mrb[0].mxu0
    %192 = vdwg.mxu0
    %vm193 = vcmask 64512
    %v195 = vsel %vm193, %v99, 0
    %v198 = vsel %vm193, %v100, 0
    %200 = vmatprep.subr.mxu0 0.0
    %201 = vmatpush1.msra.mxu0 %v101
    %202 = vmatprep.subr.mxu0 0.0
    %203 = vmatpush1.msra.mxu0 0.0
    %204 = vmatprep.subr.mxu0 0.0
    %205 = vmatpush1.msra.mxu0 0.0
    %206 = vmatprep.subr.mxu0 0.0
    %207 = vmatpush1.msra.mxu0 0.0
    %208 = vmatprep.subr.mxu0 0.0
    %209 = vmatpush1.msra.mxu0 0.0
    %210 = vmatprep.subr.mxu0 0.0
    %211 = vmatpush1.msra.mxu0 0.0
    %212 = vmatprep.subr.mxu0 0.0
    %213 = vmatpush1.msra.mxu0 0.0
    %214 = vmatprep.subr.mxu0 0.0
    %215 = vmatpush1.msra.mxu0 0.0
    %216 = vmatprep.subr.mxu0 0.0
    %217 = vmatpush1.msra.mxu0 0.0
    %218 = vmatprep.subr.mxu0 0.0
    %219 = vmatpush1.msra.mxu0 0.0
    %220 = vmatprep.subr.mxu0 0.0
    %221 = vmatpush1.msra.mxu0 0.0
    %222 = vmatprep.subr.mxu0 0.0
    %223 = vmatpush1.msra.mxu0 0.0
    %224 = vmatprep.subr.mxu0 0.0
    %225 = vmatpush1.msra.mxu0 0.0
    %226 = vmatprep.subr.mxu0 0.0
    %227 = vmatpush1.msra.mxu0 0.0
    %228 = vmatprep.subr.mxu0 0.0
    %229 = vmatpush1.msra.mxu0 0.0
    %230 = vmatprep.subr.mxu0 0.0
    %231 = vmatpush1.msra.mxu0 0.0
    %232 = vmatprep.subr.mxu0 0.0
    %233 = vmatpush1.msra.mxu0 0.0
    %234 = vmatprep.subr.mxu0 0.0
    %235 = vmatpush1.msra.mxu0 0.0
    %236 = vmatprep.subr.mxu0 0.0
    %237 = vmatpush1.msra.mxu0 0.0
    %238 = vmatprep.subr.mxu0 0.0
    %239 = vmatpush1.msra.mxu0 0.0
    %240 = vmatprep.subr.mxu0 0.0
    %241 = vmatpush1.msra.mxu0 0.0
    %242 = vmatprep.subr.mxu0 0.0
    %243 = vmatpush1.msra.mxu0 0.0
    %244 = vmatprep.subr.mxu0 0.0
    %245 = vmatpush1.msra.mxu0 0.0
    %246 = vmatprep.subr.mxu0 0.0
    %247 = vmatpush1.msra.mxu0 0.0
    %248 = vmatprep.subr.mxu0 0.0
    %249 = vmatpush1.msra.mxu0 0.0
    %250 = vmatprep.subr.mxu0 0.0
    %251 = vmatpush1.msra.mxu0 0.0
    %252 = vmatprep.subr.mxu0 0.0
    %253 = vmatpush1.msra.mxu0 0.0
    %254 = vmatprep.subr.mxu0 0.0
    %255 = vmatpush1.msra.mxu0 0.0
    %256 = vmatprep.subr.mxu0 0.0
    %257 = vmatpush1.msra.mxu0 0.0
    %258 = vmatprep.subr.mxu0 0.0
    %259 = vmatpush1.msra.mxu0 0.0
    %260 = vmatprep.subr.mxu0 0.0
    %261 = vmatpush1.msra.mxu0 0.0
    %262 = vmatprep.subr.mxu0 0.0
    %263 = vmatpush1.msra.mxu0 0.0
    %264 = vmatprep.mubr.f32.mxu0 0.0
    %265 = vmatmul.mubr.f32.gmra.mrb[0].mxu0 %v195
    %v266 = vpop.f32.mrb[0].mxu0
    %v267 = vadd.f32 %v185, %v266
    %v268 = vpop.f32.mrb[0].mxu0
    %269 = vmatprep.mubr.f32.mxu0 0.0
    %270 = vmatmul.mubr.f32.gmra.mrb[0].mxu0 %v198
    %v271 = vpop.f32.mrb[0].mxu0
    %v272 = vadd.f32 %v190, %v271
    %v273 = vpop.f32.mrb[0].mxu0
    %274 = vdwg.mxu0
    %v275 = vxor.u32 %v267, 2147483648
    %v276 = vxor.u32 %v272, 2147483648
    %v277 = vmul.f32 %v275, 1.442695
    %v278 = vpow.pop %v277
    %v279 = vmul.f32 %v276, 1.442695
    %v280 = vpow.pop %v279
    %v281 = vadd.f32 %v278, 1.0
    %v282 = vadd.f32 %v280, 1.0
    %v283 = vrcp.pop %v281
    %v284 = vmul.f32 1.0, %v283
    %v285 = vrcp.pop %v282
    %v286 = vmul.f32 1.0, %v285
    %v287 = vld [vmem:[%s2 + $0x8] sm:$0xff]
    %v288 = vld [vmem:[#allocation5 + $0x8] sm:$0xff]
    %v289 = vld [vmem:[#allocation5 + $0x20] sm:$0xff]
    %v290 = vld [vmem:[#allocation5 + $0x38] sm:$0xff]
    %v291 = vld [vmem:[#allocation5 + $0x50] sm:$0xff]
    %v292 = vld [vmem:[#allocation5 + $0x68] sm:$0xff]
    %v293 = vld [vmem:[#allocation5 + $0x80] sm:$0xff]
    %v294 = vld [vmem:[#allocation5 + $0x98] sm:$0xff]
    %v295 = vld [vmem:[#allocation5 + $0xb0] sm:$0xff]
    %v296 = vld [vmem:[#allocation5 + $0xc8] sm:$0xff]
    %v297 = vld [vmem:[#allocation5 + $0xe0] sm:$0xff]
    %v298 = vld [vmem:[#allocation5 + $0xf8] sm:$0xff]
    %v299 = vld [vmem:[#allocation5 + $0x110] sm:$0xff]
    %v300 = vld [vmem:[#allocation5 + $0x128] sm:$0xff]
    %v301 = vld [vmem:[#allocation5 + $0x140] sm:$0xff]
    %v302 = vld [vmem:[#allocation5 + $0x158] sm:$0xff]
    %v303 = vld [vmem:[#allocation5 + $0x170] sm:$0xff]
    %304 = vmatprep.subr.mxu0 0.0
    %305 = vmatpush1.msra.mxu0 %v288
    %306 = vmatprep.subr.mxu0 0.0
    %307 = vmatpush1.msra.mxu0 %v289
    %308 = vmatprep.subr.mxu0 0.0
    %309 = vmatpush1.msra.mxu0 %v290
    %310 = vmatprep.subr.mxu0 0.0
    %311 = vmatpush1.msra.mxu0 %v291
    %312 = vmatprep.subr.mxu0 0.0
    %313 = vmatpush1.msra.mxu0 %v292
    %314 = vmatprep.subr.mxu0 0.0
    %315 = vmatpush1.msra.mxu0 %v293
    %316 = vmatprep.subr.mxu0 0.0
    %317 = vmatpush1.msra.mxu0 %v294
    %318 = vmatprep.subr.mxu0 0.0
    %319 = vmatpush1.msra.mxu0 %v295
    %320 = vmatprep.subr.mxu0 0.0
    %321 = vmatpush1.msra.mxu0 %v296
    %322 = vmatprep.subr.mxu0 0.0
    %323 = vmatpush1.msra.mxu0 %v297
    %324 = vmatprep.subr.mxu0 0.0
    %325 = vmatpush1.msra.mxu0 %v298
    %326 = vmatprep.subr.mxu0 0.0
    %327 = vmatpush1.msra.mxu0 %v299
    %328 = vmatprep.subr.mxu0 0.0
    %329 = vmatpush1.msra.mxu0 %v300
    %330 = vmatprep.subr.mxu0 0.0
    %331 = vmatpush1.msra.mxu0 %v301
    %332 = vmatprep.subr.mxu0 0.0
    %333 = vmatpush1.msra.mxu0 %v302
    %334 = vmatprep.subr.mxu0 0.0
    %335 = vmatpush1.msra.mxu0 %v303
    %336 = vmatprep.subr.mxu0 0.0
    %337 = vmatpush1.msra.mxu0 0.0
    %338 = vmatprep.subr.mxu0 0.0
    %339 = vmatpush1.msra.mxu0 0.0
    %340 = vmatprep.subr.mxu0 0.0
    %341 = vmatpush1.msra.mxu0 0.0
    %342 = vmatprep.subr.mxu0 0.0
    %343 = vmatpush1.msra.mxu0 0.0
    %344 = vmatprep.subr.mxu0 0.0
    %345 = vmatpush1.msra.mxu0 0.0
    %346 = vmatprep.subr.mxu0 0.0
    %347 = vmatpush1.msra.mxu0 0.0
    %348 = vmatprep.subr.mxu0 0.0
    %349 = vmatpush1.msra.mxu0 0.0
    %350 = vmatprep.subr.mxu0 0.0
    %351 = vmatpush1.msra.mxu0 0.0
    %352 = vmatprep.subr.mxu0 0.0
    %353 = vmatpush1.msra.mxu0 0.0
    %354 = vmatprep.subr.mxu0 0.0
    %355 = vmatpush1.msra.mxu0 0.0
    %356 = vmatprep.subr.mxu0 0.0
    %357 = vmatpush1.msra.mxu0 0.0
    %358 = vmatprep.subr.mxu0 0.0
    %359 = vmatpush1.msra.mxu0 0.0
    %360 = vmatprep.subr.mxu0 0.0
    %361 = vmatpush1.msra.mxu0 0.0
    %362 = vmatprep.subr.mxu0 0.0
    %363 = vmatpush1.msra.mxu0 0.0
    %364 = vmatprep.subr.mxu0 0.0
    %365 = vmatpush1.msra.mxu0 0.0
    %366 = vmatprep.subr.mxu0 0.0
    %367 = vmatpush1.msra.mxu0 0.0
    %368 = vmatprep.mubr.f32.mxu0 0.0
    %369 = vmatmul.mubr.f32.gmra.mrb[0].mxu0 %v95
    %v370 = vpop.f32.mrb[0].mxu0
    %v371 = vadd.f32 0.0, %v370
    %v372 = vpop.f32.mrb[0].mxu0
    %373 = vmatprep.mubr.f32.mxu0 0.0
    %374 = vmatmul.mubr.f32.gmra.mrb[0].mxu0 %v96
    %v375 = vpop.f32.mrb[0].mxu0
    %v376 = vadd.f32 0.0, %v375
    %v377 = vpop.f32.mrb[0].mxu0
    %378 = vdwg.mxu0
    %379 = vmatprep.subr.mxu0 0.0
    %380 = vmatpush1.msra.mxu0 %v287
    %381 = vmatprep.subr.mxu0 0.0
    %382 = vmatpush1.msra.mxu0 0.0
    %383 = vmatprep.subr.mxu0 0.0
    %384 = vmatpush1.msra.mxu0 0.0
    %385 = vmatprep.subr.mxu0 0.0
    %386 = vmatpush1.msra.mxu0 0.0
    %387 = vmatprep.subr.mxu0 0.0
    %388 = vmatpush1.msra.mxu0 0.0
    %389 = vmatprep.subr.mxu0 0.0
    %390 = vmatpush1.msra.mxu0 0.0
    %391 = vmatprep.subr.mxu0 0.0
    %392 = vmatpush1.msra.mxu0 0.0
    %393 = vmatprep.subr.mxu0 0.0
    %394 = vmatpush1.msra.mxu0 0.0
    %395 = vmatprep.subr.mxu0 0.0
    %396 = vmatpush1.msra.mxu0 0.0
    %397 = vmatprep.subr.mxu0 0.0
    %398 = vmatpush1.msra.mxu0 0.0
    %399 = vmatprep.subr.mxu0 0.0
    %400 = vmatpush1.msra.mxu0 0.0
    %401 = vmatprep.subr.mxu0 0.0
    %402 = vmatpush1.msra.mxu0 0.0
    %403 = vmatprep.subr.mxu0 0.0
    %404 = vmatpush1.msra.mxu0 0.0
    %405 = vmatprep.subr.mxu0 0.0
    %406 = vmatpush1.msra.mxu0 0.0
    %407 = vmatprep.subr.mxu0 0.0
    %408 = vmatpush1.msra.mxu0 0.0
    %409 = vmatprep.subr.mxu0 0.0
    %410 = vmatpush1.msra.mxu0 0.0
    %411 = vmatprep.subr.mxu0 0.0
    %412 = vmatpush1.msra.mxu0 0.0
    %413 = vmatprep.subr.mxu0 0.0
    %414 = vmatpush1.msra.mxu0 0.0
    %415 = vmatprep.subr.mxu0 0.0
    %416 = vmatpush1.msra.mxu0 0.0
    %417 = vmatprep.subr.mxu0 0.0
    %418 = vmatpush1.msra.mxu0 0.0
    %419 = vmatprep.subr.mxu0 0.0
    %420 = vmatpush1.msra.mxu0 0.0
    %421 = vmatprep.subr.mxu0 0.0
    %422 = vmatpush1.msra.mxu0 0.0
    %423 = vmatprep.subr.mxu0 0.0
    %424 = vmatpush1.msra.mxu0 0.0
    %425 = vmatprep.subr.mxu0 0.0
    %426 = vmatpush1.msra.mxu0 0.0
    %427 = vmatprep.subr.mxu0 0.0
    %428 = vmatpush1.msra.mxu0 0.0
    %429 = vmatprep.subr.mxu0 0.0
    %430 = vmatpush1.msra.mxu0 0.0
    %431 = vmatprep.subr.mxu0 0.0
    %432 = vmatpush1.msra.mxu0 0.0
    %433 = vmatprep.subr.mxu0 0.0
    %434 = vmatpush1.msra.mxu0 0.0
    %435 = vmatprep.subr.mxu0 0.0
    %436 = vmatpush1.msra.mxu0 0.0
    %437 = vmatprep.subr.mxu0 0.0
    %438 = vmatpush1.msra.mxu0 0.0
    %439 = vmatprep.subr.mxu0 0.0
    %440 = vmatpush1.msra.mxu0 0.0
    %441 = vmatprep.subr.mxu0 0.0
    %442 = vmatpush1.msra.mxu0 0.0
    %443 = vmatprep.mubr.f32.mxu0 0.0
    %444 = vmatmul.mubr.f32.gmra.mrb[0].mxu0 %v195
    %v445 = vpop.f32.mrb[0].mxu0
    %v446 = vadd.f32 %v371, %v445
    %v447 = vpop.f32.mrb[0].mxu0
    %448 = vmatprep.mubr.f32.mxu0 0.0
    %449 = vmatmul.mubr.f32.gmra.mrb[0].mxu0 %v198
    %v450 = vpop.f32.mrb[0].mxu0
    %v451 = vadd.f32 %v376, %v450
    %v452 = vpop.f32.mrb[0].mxu0
    %453 = vdwg.mxu0
    %v454 = vxor.u32 %v446, 2147483648
    %v455 = vxor.u32 %v451, 2147483648
    %v456 = vmul.f32 %v454, 1.442695
    %v457 = vpow.pop %v456
    %v458 = vmul.f32 %v455, 1.442695
    %v459 = vpow.pop %v458
    %v460 = vadd.f32 %v457, 1.0
    %v461 = vadd.f32 %v459, 1.0
    %v462 = vrcp.pop %v460
    %v463 = vmul.f32 1.0, %v462
    %v464 = vrcp.pop %v461
    %v465 = vmul.f32 1.0, %v464
    %v466 = vld [vmem:[%s2 + $0x10] sm:$0xff]
    %v467 = vld [vmem:[#allocation5 + $0x10] sm:$0xff]
    %v468 = vld [vmem:[#allocation5 + $0x28] sm:$0xff]
    %v469 = vld [vmem:[#allocation5 + $0x40] sm:$0xff]
    %v470 = vld [vmem:[#allocation5 + $0x58] sm:$0xff]
    %v471 = vld [vmem:[#allocation5 + $0x70] sm:$0xff]
    %v472 = vld [vmem:[#allocation5 + $0x88] sm:$0xff]
    %v473 = vld [vmem:[#allocation5 + $0xa0] sm:$0xff]
    %v474 = vld [vmem:[#allocation5 + $0xb8] sm:$0xff]
    %v475 = vld [vmem:[#allocation5 + $0xd0] sm:$0xff]
    %v476 = vld [vmem:[#allocation5 + $0xe8] sm:$0xff]
    %v477 = vld [vmem:[#allocation5 + $0x100] sm:$0xff]
    %v478 = vld [vmem:[#allocation5 + $0x118] sm:$0xff]
    %v479 = vld [vmem:[#allocation5 + $0x130] sm:$0xff]
    %v480 = vld [vmem:[#allocation5 + $0x148] sm:$0xff]
    %v481 = vld [vmem:[#allocation5 + $0x160] sm:$0xff]
    %v482 = vld [vmem:[#allocation5 + $0x178] sm:$0xff]
    %v483 = vld [vmem:[%s4] sm:$0x1]
    %v485 = vlaneseq
    %v486 = vshrl.u32 %v485, 7
    %v487 = vsub.s32 0, %v486
    %v488 = vrot.slane %v483, %v487
    %490 = vmatprep.subr.mxu0 0.0
    %491 = vmatpush1.msra.mxu0 %v467
    %492 = vmatprep.subr.mxu0 0.0
    %493 = vmatpush1.msra.mxu0 %v468
    %494 = vmatprep.subr.mxu0 0.0
    %495 = vmatpush1.msra.mxu0 %v469
    %496 = vmatprep.subr.mxu0 0.0
    %497 = vmatpush1.msra.mxu0 %v470
    %498 = vmatprep.subr.mxu0 0.0
    %499 = vmatpush1.msra.mxu0 %v471
    %500 = vmatprep.subr.mxu0 0.0
    %501 = vmatpush1.msra.mxu0 %v472
    %502 = vmatprep.subr.mxu0 0.0
    %503 = vmatpush1.msra.mxu0 %v473
    %504 = vmatprep.subr.mxu0 0.0
    %505 = vmatpush1.msra.mxu0 %v474
    %506 = vmatprep.subr.mxu0 0.0
    %507 = vmatpush1.msra.mxu0 %v475
    %508 = vmatprep.subr.mxu0 0.0
    %509 = vmatpush1.msra.mxu0 %v476
    %510 = vmatprep.subr.mxu0 0.0
    %511 = vmatpush1.msra.mxu0 %v477
    %512 = vmatprep.subr.mxu0 0.0
    %513 = vmatpush1.msra.mxu0 %v478
    %514 = vmatprep.subr.mxu0 0.0
    %515 = vmatpush1.msra.mxu0 %v479
    %516 = vmatprep.subr.mxu0 0.0
    %517 = vmatpush1.msra.mxu0 %v480
    %518 = vmatprep.subr.mxu0 0.0
    %519 = vmatpush1.msra.mxu0 %v481
    %520 = vmatprep.subr.mxu0 0.0
    %521 = vmatpush1.msra.mxu0 %v482
    %522 = vmatprep.subr.mxu0 0.0
    %523 = vmatpush1.msra.mxu0 0.0
    %524 = vmatprep.subr.mxu0 0.0
    %525 = vmatpush1.msra.mxu0 0.0
    %526 = vmatprep.subr.mxu0 0.0
    %527 = vmatpush1.msra.mxu0 0.0
    %528 = vmatprep.subr.mxu0 0.0
    %529 = vmatpush1.msra.mxu0 0.0
    %530 = vmatprep.subr.mxu0 0.0
    %531 = vmatpush1.msra.mxu0 0.0
    %532 = vmatprep.subr.mxu0 0.0
    %533 = vmatpush1.msra.mxu0 0.0
    %534 = vmatprep.subr.mxu0 0.0
    %535 = vmatpush1.msra.mxu0 0.0
    %536 = vmatprep.subr.mxu0 0.0
    %537 = vmatpush1.msra.mxu0 0.0
    %538 = vmatprep.subr.mxu0 0.0
    %539 = vmatpush1.msra.mxu0 0.0
    %540 = vmatprep.subr.mxu0 0.0
    %541 = vmatpush1.msra.mxu0 0.0
    %542 = vmatprep.subr.mxu0 0.0
    %543 = vmatpush1.msra.mxu0 0.0
    %544 = vmatprep.subr.mxu0 0.0
    %545 = vmatpush1.msra.mxu0 0.0
    %546 = vmatprep.subr.mxu0 0.0
    %547 = vmatpush1.msra.mxu0 0.0
    %548 = vmatprep.subr.mxu0 0.0
    %549 = vmatpush1.msra.mxu0 0.0
    %550 = vmatprep.subr.mxu0 0.0
    %551 = vmatpush1.msra.mxu0 0.0
    %552 = vmatprep.subr.mxu0 0.0
    %553 = vmatpush1.msra.mxu0 0.0
    %554 = vmatprep.mubr.f32.mxu0 0.0
    %555 = vmatmul.mubr.f32.gmra.mrb[0].mxu0 %v95
    %v556 = vpop.f32.mrb[0].mxu0
    %v557 = vadd.f32 %v488, %v556
    %v558 = vpop.f32.mrb[0].mxu0
    %559 = vmatprep.mubr.f32.mxu0 0.0
    %560 = vmatmul.mubr.f32.gmra.mrb[0].mxu0 %v96
    %v561 = vpop.f32.mrb[0].mxu0
    %v562 = vadd.f32 %v488, %v561
    %v563 = vpop.f32.mrb[0].mxu0
    %564 = vdwg.mxu0
    %v565 = vmul.f32 %v284, %v557
    %v566 = vmul.f32 %v286, %v562
    %567 = vmatprep.subr.mxu0 0.0
    %568 = vmatpush1.msra.mxu0 %v466
    %569 = vmatprep.subr.mxu0 0.0
    %570 = vmatpush1.msra.mxu0 0.0
    %571 = vmatprep.subr.mxu0 0.0
    %572 = vmatpush1.msra.mxu0 0.0
    %573 = vmatprep.subr.mxu0 0.0
    %574 = vmatpush1.msra.mxu0 0.0
    %575 = vmatprep.subr.mxu0 0.0
    %576 = vmatpush1.msra.mxu0 0.0
    %577 = vmatprep.subr.mxu0 0.0
    %578 = vmatpush1.msra.mxu0 0.0
    %579 = vmatprep.subr.mxu0 0.0
    %580 = vmatpush1.msra.mxu0 0.0
    %581 = vmatprep.subr.mxu0 0.0
    %582 = vmatpush1.msra.mxu0 0.0
    %583 = vmatprep.subr.mxu0 0.0
    %584 = vmatpush1.msra.mxu0 0.0
    %585 = vmatprep.subr.mxu0 0.0
    %586 = vmatpush1.msra.mxu0 0.0
    %587 = vmatprep.subr.mxu0 0.0
    %588 = vmatpush1.msra.mxu0 0.0
    %589 = vmatprep.subr.mxu0 0.0
    %590 = vmatpush1.msra.mxu0 0.0
    %591 = vmatprep.subr.mxu0 0.0
    %592 = vmatpush1.msra.mxu0 0.0
    %593 = vmatprep.subr.mxu0 0.0
    %594 = vmatpush1.msra.mxu0 0.0
    %595 = vmatprep.subr.mxu0 0.0
    %596 = vmatpush1.msra.mxu0 0.0
    %597 = vmatprep.subr.mxu0 0.0
    %598 = vmatpush1.msra.mxu0 0.0
    %599 = vmatprep.subr.mxu0 0.0
    %600 = vmatpush1.msra.mxu0 0.0
    %601 = vmatprep.subr.mxu0 0.0
    %602 = vmatpush1.msra.mxu0 0.0
    %603 = vmatprep.subr.mxu0 0.0
    %604 = vmatpush1.msra.mxu0 0.0
    %605 = vmatprep.subr.mxu0 0.0
    %606 = vmatpush1.msra.mxu0 0.0
    %607 = vmatprep.subr.mxu0 0.0
    %608 = vmatpush1.msra.mxu0 0.0
    %609 = vmatprep.subr.mxu0 0.0
    %610 = vmatpush1.msra.mxu0 0.0
    %611 = vmatprep.subr.mxu0 0.0
    %612 = vmatpush1.msra.mxu0 0.0
    %613 = vmatprep.subr.mxu0 0.0
    %614 = vmatpush1.msra.mxu0 0.0
    %615 = vmatprep.subr.mxu0 0.0
    %616 = vmatpush1.msra.mxu0 0.0
    %617 = vmatprep.subr.mxu0 0.0
    %618 = vmatpush1.msra.mxu0 0.0
    %619 = vmatprep.subr.mxu0 0.0
    %620 = vmatpush1.msra.mxu0 0.0
    %621 = vmatprep.subr.mxu0 0.0
    %622 = vmatpush1.msra.mxu0 0.0
    %623 = vmatprep.subr.mxu0 0.0
    %624 = vmatpush1.msra.mxu0 0.0
    %625 = vmatprep.subr.mxu0 0.0
    %626 = vmatpush1.msra.mxu0 0.0
    %627 = vmatprep.subr.mxu0 0.0
    %628 = vmatpush1.msra.mxu0 0.0
    %629 = vmatprep.subr.mxu0 0.0
    %630 = vmatpush1.msra.mxu0 0.0
    %631 = vmatprep.mubr.f32.mxu0 0.0
    %632 = vmatmul.mubr.f32.gmra.mrb[0].mxu0 %v195
    %v633 = vpop.f32.mrb[0].mxu0
    %v634 = vadd.f32 %v565, %v633
    %v635 = vpop.f32.mrb[0].mxu0
    %636 = vmatprep.mubr.f32.mxu0 0.0
    %637 = vmatmul.mubr.f32.gmra.mrb[0].mxu0 %v198
    %v638 = vpop.f32.mrb[0].mxu0
    %v639 = vadd.f32 %v566, %v638
    %v640 = vpop.f32.mrb[0].mxu0
    %641 = vdwg.mxu0
    %v642 = vtanh.pop %v634
    %v643 = vtanh.pop %v639
    %v644 = vsub.f32 1.0, %v463
    %v645 = vsub.f32 1.0, %v465
    %v646 = vmul.f32 %v644, %v642
    %v647 = vmul.f32 %v645, %v643
    %v648 = vmul.f32 %v463, %v95
    %v649 = vmul.f32 %v465, %v96
    %v650 = vadd.f32 %v646, %v648
    %v651 = vadd.f32 %v647, %v649
    %v652 = vld [vmem:[#allocation7] sm:$0xff]
    %v653 = vld [vmem:[#allocation8] sm:$0xff]
    %v654 = vld [vmem:[#allocation8 + $0x18] sm:$0xff]
    %v655 = vld [vmem:[#allocation8 + $0x30] sm:$0xff]
    %v656 = vld [vmem:[#allocation8 + $0x48] sm:$0xff]
    %v657 = vld [vmem:[#allocation8 + $0x60] sm:$0xff]
    %v658 = vld [vmem:[#allocation8 + $0x78] sm:$0xff]
    %v659 = vld [vmem:[#allocation8 + $0x90] sm:$0xff]
    %v660 = vld [vmem:[#allocation8 + $0xa8] sm:$0xff]
    %v661 = vld [vmem:[#allocation8 + $0xc0] sm:$0xff]
    %v662 = vld [vmem:[#allocation8 + $0xd8] sm:$0xff]
    %v663 = vld [vmem:[#allocation8 + $0xf0] sm:$0xff]
    %v664 = vld [vmem:[#allocation8 + $0x108] sm:$0xff]
    %v665 = vld [vmem:[#allocation8 + $0x120] sm:$0xff]
    %v666 = vld [vmem:[#allocation8 + $0x138] sm:$0xff]
    %v667 = vld [vmem:[#allocation8 + $0x150] sm:$0xff]
    %v668 = vld [vmem:[#allocation8 + $0x168] sm:$0xff]
    %669 = vmatprep.subr.mxu0 0.0
    %670 = vmatpush1.msra.mxu0 %v653
    %671 = vmatprep.subr.mxu0 0.0
    %672 = vmatpush1.msra.mxu0 %v654
    %673 = vmatprep.subr.mxu0 0.0
    %674 = vmatpush1.msra.mxu0 %v655
    %675 = vmatprep.subr.mxu0 0.0
    %676 = vmatpush1.msra.mxu0 %v656
    %677 = vmatprep.subr.mxu0 0.0
    %678 = vmatpush1.msra.mxu0 %v657
    %679 = vmatprep.subr.mxu0 0.0
    %680 = vmatpush1.msra.mxu0 %v658
    %681 = vmatprep.subr.mxu0 0.0
    %682 = vmatpush1.msra.mxu0 %v659
    %683 = vmatprep.subr.mxu0 0.0
    %684 = vmatpush1.msra.mxu0 %v660
    %685 = vmatprep.subr.mxu0 0.0
    %686 = vmatpush1.msra.mxu0 %v661
    %687 = vmatprep.subr.mxu0 0.0
    %688 = vmatpush1.msra.mxu0 %v662
    %689 = vmatprep.subr.mxu0 0.0
    %690 = vmatpush1.msra.mxu0 %v663
    %691 = vmatprep.subr.mxu0 0.0
    %692 = vmatpush1.msra.mxu0 %v664
    %693 = vmatprep.subr.mxu0 0.0
    %694 = vmatpush1.msra.mxu0 %v665
    %695 = vmatprep.subr.mxu0 0.0
    %696 = vmatpush1.msra.mxu0 %v666
    %697 = vmatprep.subr.mxu0 0.0
    %698 = vmatpush1.msra.mxu0 %v667
    %699 = vmatprep.subr.mxu0 0.0
    %700 = vmatpush1.msra.mxu0 %v668
    %701 = vmatprep.subr.mxu0 0.0
    %702 = vmatpush1.msra.mxu0 0.0
    %703 = vmatprep.subr.mxu0 0.0
    %704 = vmatpush1.msra.mxu0 0.0
    %705 = vmatprep.subr.mxu0 0.0
    %706 = vmatpush1.msra.mxu0 0.0
    %707 = vmatprep.subr.mxu0 0.0
    %708 = vmatpush1.msra.mxu0 0.0
    %709 = vmatprep.subr.mxu0 0.0
    %710 = vmatpush1.msra.mxu0 0.0
    %711 = vmatprep.subr.mxu0 0.0
    %712 = vmatpush1.msra.mxu0 0.0
    %713 = vmatprep.subr.mxu0 0.0
    %714 = vmatpush1.msra.mxu0 0.0
    %715 = vmatprep.subr.mxu0 0.0
    %716 = vmatpush1.msra.mxu0 0.0
    %717 = vmatprep.subr.mxu0 0.0
    %718 = vmatpush1.msra.mxu0 0.0
    %719 = vmatprep.subr.mxu0 0.0
    %720 = vmatpush1.msra.mxu0 0.0
    %721 = vmatprep.subr.mxu0 0.0
    %722 = vmatpush1.msra.mxu0 0.0
    %723 = vmatprep.subr.mxu0 0.0
    %724 = vmatpush1.msra.mxu0 0.0
    %725 = vmatprep.subr.mxu0 0.0
    %726 = vmatpush1.msra.mxu0 0.0
    %727 = vmatprep.subr.mxu0 0.0
    %728 = vmatpush1.msra.mxu0 0.0
    %729 = vmatprep.subr.mxu0 0.0
    %730 = vmatpush1.msra.mxu0 0.0
    %731 = vmatprep.subr.mxu0 0.0
    %732 = vmatpush1.msra.mxu0 0.0
    %733 = vmatprep.mubr.f32.mxu0 0.0
    %734 = vmatmul.mubr.f32.gmra.mrb[0].mxu0 %v650
    %v735 = vpop.f32.mrb[0].mxu0
    %v736 = vadd.f32 0.0, %v735
    %v737 = vpop.f32.mrb[0].mxu0
    %738 = vmatprep.mubr.f32.mxu0 0.0
    %739 = vmatmul.mubr.f32.gmra.mrb[0].mxu0 %v651
    %v740 = vpop.f32.mrb[0].mxu0
    %v741 = vadd.f32 0.0, %v740
    %v742 = vpop.f32.mrb[0].mxu0
    %743 = vdwg.mxu0
    %744 = vmatprep.subr.mxu0 0.0
    %745 = vmatpush1.msra.mxu0 %v652
    %746 = vmatprep.subr.mxu0 0.0
    %747 = vmatpush1.msra.mxu0 0.0
    %748 = vmatprep.subr.mxu0 0.0
    %749 = vmatpush1.msra.mxu0 0.0
    %750 = vmatprep.subr.mxu0 0.0
    %751 = vmatpush1.msra.mxu0 0.0
    %752 = vmatprep.subr.mxu0 0.0
    %753 = vmatpush1.msra.mxu0 0.0
    %754 = vmatprep.subr.mxu0 0.0
    %755 = vmatpush1.msra.mxu0 0.0
    %756 = vmatprep.subr.mxu0 0.0
    %757 = vmatpush1.msra.mxu0 0.0
    %758 = vmatprep.subr.mxu0 0.0
    %759 = vmatpush1.msra.mxu0 0.0
    %760 = vmatprep.subr.mxu0 0.0
    %761 = vmatpush1.msra.mxu0 0.0
    %762 = vmatprep.subr.mxu0 0.0
    %763 = vmatpush1.msra.mxu0 0.0
    %764 = vmatprep.subr.mxu0 0.0
    %765 = vmatpush1.msra.mxu0 0.0
    %766 = vmatprep.subr.mxu0 0.0
    %767 = vmatpush1.msra.mxu0 0.0
    %768 = vmatprep.subr.mxu0 0.0
    %769 = vmatpush1.msra.mxu0 0.0
    %770 = vmatprep.subr.mxu0 0.0
    %771 = vmatpush1.msra.mxu0 0.0
    %772 = vmatprep.subr.mxu0 0.0
    %773 = vmatpush1.msra.mxu0 0.0
    %774 = vmatprep.subr.mxu0 0.0
    %775 = vmatpush1.msra.mxu0 0.0
    %776 = vmatprep.subr.mxu0 0.0
    %777 = vmatpush1.msra.mxu0 0.0
    %778 = vmatprep.subr.mxu0 0.0
    %779 = vmatpush1.msra.mxu0 0.0
    %780 = vmatprep.subr.mxu0 0.0
    %781 = vmatpush1.msra.mxu0 0.0
    %782 = vmatprep.subr.mxu0 0.0
    %783 = vmatpush1.msra.mxu0 0.0
    %784 = vmatprep.subr.mxu0 0.0
    %785 = vmatpush1.msra.mxu0 0.0
    %786 = vmatprep.subr.mxu0 0.0
    %787 = vmatpush1.msra.mxu0 0.0
    %788 = vmatprep.subr.mxu0 0.0
    %789 = vmatpush1.msra.mxu0 0.0
    %790 = vmatprep.subr.mxu0 0.0
    %791 = vmatpush1.msra.mxu0 0.0
    %792 = vmatprep.subr.mxu0 0.0
    %793 = vmatpush1.msra.mxu0 0.0
    %794 = vmatprep.subr.mxu0 0.0
    %795 = vmatpush1.msra.mxu0 0.0
    %796 = vmatprep.subr.mxu0 0.0
    %797 = vmatpush1.msra.mxu0 0.0
    %798 = vmatprep.subr.mxu0 0.0
    %799 = vmatpush1.msra.mxu0 0.0
    %800 = vmatprep.subr.mxu0 0.0
    %801 = vmatpush1.msra.mxu0 0.0
    %802 = vmatprep.subr.mxu0 0.0
    %803 = vmatpush1.msra.mxu0 0.0
    %804 = vmatprep.subr.mxu0 0.0
    %805 = vmatpush1.msra.mxu0 0.0
    %806 = vmatprep.subr.mxu0 0.0
    %807 = vmatpush1.msra.mxu0 0.0
    %808 = vmatprep.mubr.f32.mxu0 0.0
    %809 = vmatmul.mubr.f32.gmra.mrb[0].mxu0 %v195
    %v810 = vpop.f32.mrb[0].mxu0
    %v811 = vadd.f32 %v736, %v810
    %v812 = vpop.f32.mrb[0].mxu0
    %813 = vmatprep.mubr.f32.mxu0 0.0
    %814 = vmatmul.mubr.f32.gmra.mrb[0].mxu0 %v198
    %v815 = vpop.f32.mrb[0].mxu0
    %v816 = vadd.f32 %v741, %v815
    %v817 = vpop.f32.mrb[0].mxu0
    %818 = vdwg.mxu0
    %v819 = vxor.u32 %v811, 2147483648
    %v820 = vxor.u32 %v816, 2147483648
    %v821 = vmul.f32 %v819, 1.442695
    %v822 = vpow.pop %v821
    %v823 = vmul.f32 %v820, 1.442695
    %v824 = vpow.pop %v823
    %v825 = vadd.f32 %v822, 1.0
    %v826 = vadd.f32 %v824, 1.0
    %v827 = vrcp.pop %v825
    %v828 = vmul.f32 1.0, %v827
    %v829 = vrcp.pop %v826
    %v830 = vmul.f32 1.0, %v829
    %v831 = vld [vmem:[#allocation7 + $0x8] sm:$0xff]
    %v832 = vld [vmem:[#allocation8 + $0x8] sm:$0xff]
    %v833 = vld [vmem:[#allocation8 + $0x20] sm:$0xff]
    %v834 = vld [vmem:[#allocation8 + $0x38] sm:$0xff]
    %v835 = vld [vmem:[#allocation8 + $0x50] sm:$0xff]
    %v836 = vld [vmem:[#allocation8 + $0x68] sm:$0xff]
    %v837 = vld [vmem:[#allocation8 + $0x80] sm:$0xff]
    %v838 = vld [vmem:[#allocation8 + $0x98] sm:$0xff]
    %v839 = vld [vmem:[#allocation8 + $0xb0] sm:$0xff]
    %v840 = vld [vmem:[#allocation8 + $0xc8] sm:$0xff]
    %v841 = vld [vmem:[#allocation8 + $0xe0] sm:$0xff]
    %v842 = vld [vmem:[#allocation8 + $0xf8] sm:$0xff]
    %v843 = vld [vmem:[#allocation8 + $0x110] sm:$0xff]
    %v844 = vld [vmem:[#allocation8 + $0x128] sm:$0xff]
    %v845 = vld [vmem:[#allocation8 + $0x140] sm:$0xff]
    %v846 = vld [vmem:[#allocation8 + $0x158] sm:$0xff]
    %v847 = vld [vmem:[#allocation8 + $0x170] sm:$0xff]
    %848 = vmatprep.subr.mxu0 0.0
    %849 = vmatpush1.msra.mxu0 %v832
    %850 = vmatprep.subr.mxu0 0.0
    %851 = vmatpush1.msra.mxu0 %v833
    %852 = vmatprep.subr.mxu0 0.0
    %853 = vmatpush1.msra.mxu0 %v834
    %854 = vmatprep.subr.mxu0 0.0
    %855 = vmatpush1.msra.mxu0 %v835
    %856 = vmatprep.subr.mxu0 0.0
    %857 = vmatpush1.msra.mxu0 %v836
    %858 = vmatprep.subr.mxu0 0.0
    %859 = vmatpush1.msra.mxu0 %v837
    %860 = vmatprep.subr.mxu0 0.0
    %861 = vmatpush1.msra.mxu0 %v838
    %862 = vmatprep.subr.mxu0 0.0
    %863 = vmatpush1.msra.mxu0 %v839
    %864 = vmatprep.subr.mxu0 0.0
    %865 = vmatpush1.msra.mxu0 %v840
    %866 = vmatprep.subr.mxu0 0.0
    %867 = vmatpush1.msra.mxu0 %v841
    %868 = vmatprep.subr.mxu0 0.0
    %869 = vmatpush1.msra.mxu0 %v842
    %870 = vmatprep.subr.mxu0 0.0
    %871 = vmatpush1.msra.mxu0 %v843
    %872 = vmatprep.subr.mxu0 0.0
    %873 = vmatpush1.msra.mxu0 %v844
    %874 = vmatprep.subr.mxu0 0.0
    %875 = vmatpush1.msra.mxu0 %v845
    %876 = vmatprep.subr.mxu0 0.0
    %877 = vmatpush1.msra.mxu0 %v846
    %878 = vmatprep.subr.mxu0 0.0
    %879 = vmatpush1.msra.mxu0 %v847
    %880 = vmatprep.subr.mxu0 0.0
    %881 = vmatpush1.msra.mxu0 0.0
    %882 = vmatprep.subr.mxu0 0.0
    %883 = vmatpush1.msra.mxu0 0.0
    %884 = vmatprep.subr.mxu0 0.0
    %885 = vmatpush1.msra.mxu0 0.0
    %886 = vmatprep.subr.mxu0 0.0
    %887 = vmatpush1.msra.mxu0 0.0
    %888 = vmatprep.subr.mxu0 0.0
    %889 = vmatpush1.msra.mxu0 0.0
    %890 = vmatprep.subr.mxu0 0.0
    %891 = vmatpush1.msra.mxu0 0.0
    %892 = vmatprep.subr.mxu0 0.0
    %893 = vmatpush1.msra.mxu0 0.0
    %894 = vmatprep.subr.mxu0 0.0
    %895 = vmatpush1.msra.mxu0 0.0
    %896 = vmatprep.subr.mxu0 0.0
    %897 = vmatpush1.msra.mxu0 0.0
    %898 = vmatprep.subr.mxu0 0.0
    %899 = vmatpush1.msra.mxu0 0.0
    %900 = vmatprep.subr.mxu0 0.0
    %901 = vmatpush1.msra.mxu0 0.0
    %902 = vmatprep.subr.mxu0 0.0
    %903 = vmatpush1.msra.mxu0 0.0
    %904 = vmatprep.subr.mxu0 0.0
    %905 = vmatpush1.msra.mxu0 0.0
    %906 = vmatprep.subr.mxu0 0.0
    %907 = vmatpush1.msra.mxu0 0.0
    %908 = vmatprep.subr.mxu0 0.0
    %909 = vmatpush1.msra.mxu0 0.0
    %910 = vmatprep.subr.mxu0 0.0
    %911 = vmatpush1.msra.mxu0 0.0
    %912 = vmatprep.mubr.f32.mxu0 0.0
    %913 = vmatmul.mubr.f32.gmra.mrb[0].mxu0 %v650
    %v914 = vpop.f32.mrb[0].mxu0
    %v915 = vadd.f32 0.0, %v914
    %v916 = vpop.f32.mrb[0].mxu0
    %917 = vmatprep.mubr.f32.mxu0 0.0
    %918 = vmatmul.mubr.f32.gmra.mrb[0].mxu0 %v651
    %v919 = vpop.f32.mrb[0].mxu0
    %v920 = vadd.f32 0.0, %v919
    %v921 = vpop.f32.mrb[0].mxu0
    %922 = vdwg.mxu0
    %923 = vmatprep.subr.mxu0 0.0
    %924 = vmatpush1.msra.mxu0 %v831
    %925 = vmatprep.subr.mxu0 0.0
    %926 = vmatpush1.msra.mxu0 0.0
    %927 = vmatprep.subr.mxu0 0.0
    %928 = vmatpush1.msra.mxu0 0.0
    %929 = vmatprep.subr.mxu0 0.0
    %930 = vmatpush1.msra.mxu0 0.0
    %931 = vmatprep.subr.mxu0 0.0
    %932 = vmatpush1.msra.mxu0 0.0
    %933 = vmatprep.subr.mxu0 0.0
    %934 = vmatpush1.msra.mxu0 0.0
    %935 = vmatprep.subr.mxu0 0.0
    %936 = vmatpush1.msra.mxu0 0.0
    %937 = vmatprep.subr.mxu0 0.0
    %938 = vmatpush1.msra.mxu0 0.0
    %939 = vmatprep.subr.mxu0 0.0
    %940 = vmatpush1.msra.mxu0 0.0
    %941 = vmatprep.subr.mxu0 0.0
    %942 = vmatpush1.msra.mxu0 0.0
    %943 = vmatprep.subr.mxu0 0.0
    %944 = vmatpush1.msra.mxu0 0.0
    %945 = vmatprep.subr.mxu0 0.0
    %946 = vmatpush1.msra.mxu0 0.0
    %947 = vmatprep.subr.mxu0 0.0
    %948 = vmatpush1.msra.mxu0 0.0
    %949 = vmatprep.subr.mxu0 0.0
    %950 = vmatpush1.msra.mxu0 0.0
    %951 = vmatprep.subr.mxu0 0.0
    %952 = vmatpush1.msra.mxu0 0.0
    %953 = vmatprep.subr.mxu0 0.0
    %954 = vmatpush1.msra.mxu0 0.0
    %955 = vmatprep.subr.mxu0 0.0
    %956 = vmatpush1.msra.mxu0 0.0
    %957 = vmatprep.subr.mxu0 0.0
    %958 = vmatpush1.msra.mxu0 0.0
    %959 = vmatprep.subr.mxu0 0.0
    %960 = vmatpush1.msra.mxu0 0.0
    %961 = vmatprep.subr.mxu0 0.0
    %962 = vmatpush1.msra.mxu0 0.0
    %963 = vmatprep.subr.mxu0 0.0
    %964 = vmatpush1.msra.mxu0 0.0
    %965 = vmatprep.subr.mxu0 0.0
    %966 = vmatpush1.msra.mxu0 0.0
    %967 = vmatprep.subr.mxu0 0.0
    %968 = vmatpush1.msra.mxu0 0.0
    %969 = vmatprep.subr.mxu0 0.0
    %970 = vmatpush1.msra.mxu0 0.0
    %971 = vmatprep.subr.mxu0 0.0
    %972 = vmatpush1.msra.mxu0 0.0
    %973 = vmatprep.subr.mxu0 0.0
    %974 = vmatpush1.msra.mxu0 0.0
    %975 = vmatprep.subr.mxu0 0.0
    %976 = vmatpush1.msra.mxu0 0.0
    %977 = vmatprep.subr.mxu0 0.0
    %978 = vmatpush1.msra.mxu0 0.0
    %979 = vmatprep.subr.mxu0 0.0
    %980 = vmatpush1.msra.mxu0 0.0
    %981 = vmatprep.subr.mxu0 0.0
    %982 = vmatpush1.msra.mxu0 0.0
    %983 = vmatprep.subr.mxu0 0.0
    %984 = vmatpush1.msra.mxu0 0.0
    %985 = vmatprep.subr.mxu0 0.0
    %986 = vmatpush1.msra.mxu0 0.0
    %987 = vmatprep.mubr.f32.mxu0 0.0
    %988 = vmatmul.mubr.f32.gmra.mrb[0].mxu0 %v195
    %v989 = vpop.f32.mrb[0].mxu0
    %v990 = vadd.f32 %v915, %v989
    %v991 = vpop.f32.mrb[0].mxu0
    %992 = vmatprep.mubr.f32.mxu0 0.0
    %993 = vmatmul.mubr.f32.gmra.mrb[0].mxu0 %v198
    %v994 = vpop.f32.mrb[0].mxu0
    %v995 = vadd.f32 %v920, %v994
    %v996 = vpop.f32.mrb[0].mxu0
    %997 = vdwg.mxu0
    %v998 = vxor.u32 %v990, 2147483648
    %v999 = vxor.u32 %v995, 2147483648
    %v1000 = vmul.f32 %v998, 1.442695
    %v1001 = vpow.pop %v1000
    %v1002 = vmul.f32 %v999, 1.442695
    %v1003 = vpow.pop %v1002
    %v1004 = vadd.f32 %v1001, 1.0
    %v1005 = vadd.f32 %v1003, 1.0
    %v1006 = vrcp.pop %v1004
    %v1007 = vmul.f32 1.0, %v1006
    %v1008 = vrcp.pop %v1005
    %v1009 = vmul.f32 1.0, %v1008
    %v1010 = vld [vmem:[#allocation7 + $0x10] sm:$0xff]
    %v1011 = vld [vmem:[#allocation8 + $0x10] sm:$0xff]
    %v1012 = vld [vmem:[#allocation8 + $0x28] sm:$0xff]
    %v1013 = vld [vmem:[#allocation8 + $0x40] sm:$0xff]
    %v1014 = vld [vmem:[#allocation8 + $0x58] sm:$0xff]
    %v1015 = vld [vmem:[#allocation8 + $0x70] sm:$0xff]
    %v1016 = vld [vmem:[#allocation8 + $0x88] sm:$0xff]
    %v1017 = vld [vmem:[#allocation8 + $0xa0] sm:$0xff]
    %v1018 = vld [vmem:[#allocation8 + $0xb8] sm:$0xff]
    %v1019 = vld [vmem:[#allocation8 + $0xd0] sm:$0xff]
    %v1020 = vld [vmem:[#allocation8 + $0xe8] sm:$0xff]
    %v1021 = vld [vmem:[#allocation8 + $0x100] sm:$0xff]
    %v1022 = vld [vmem:[#allocation8 + $0x118] sm:$0xff]
    %v1023 = vld [vmem:[#allocation8 + $0x130] sm:$0xff]
    %v1024 = vld [vmem:[#allocation8 + $0x148] sm:$0xff]
    %v1025 = vld [vmem:[#allocation8 + $0x160] sm:$0xff]
    %v1026 = vld [vmem:[#allocation8 + $0x178] sm:$0xff]
    %v1027 = vld [vmem:[%s7] sm:$0x1]
    %v1029 = vlaneseq
    %v1030 = vshrl.u32 %v1029, 7
    %v1031 = vsub.s32 0, %v1030
    %v1032 = vrot.slane %v1027, %v1031
    %1034 = vmatprep.subr.mxu0 0.0
    %1035 = vmatpush1.msra.mxu0 %v1011
    %1036 = vmatprep.subr.mxu0 0.0
    %1037 = vmatpush1.msra.mxu0 %v1012
    %1038 = vmatprep.subr.mxu0 0.0
    %1039 = vmatpush1.msra.mxu0 %v1013
    %1040 = vmatprep.subr.mxu0 0.0
    %1041 = vmatpush1.msra.mxu0 %v1014
    %1042 = vmatprep.subr.mxu0 0.0
    %1043 = vmatpush1.msra.mxu0 %v1015
    %1044 = vmatprep.subr.mxu0 0.0
    %1045 = vmatpush1.msra.mxu0 %v1016
    %1046 = vmatprep.subr.mxu0 0.0
    %1047 = vmatpush1.msra.mxu0 %v1017
    %1048 = vmatprep.subr.mxu0 0.0
    %1049 = vmatpush1.msra.mxu0 %v1018
    %1050 = vmatprep.subr.mxu0 0.0
    %1051 = vmatpush1.msra.mxu0 %v1019
    %1052 = vmatprep.subr.mxu0 0.0
    %1053 = vmatpush1.msra.mxu0 %v1020
    %1054 = vmatprep.subr.mxu0 0.0
    %1055 = vmatpush1.msra.mxu0 %v1021
    %1056 = vmatprep.subr.mxu0 0.0
    %1057 = vmatpush1.msra.mxu0 %v1022
    %1058 = vmatprep.subr.mxu0 0.0
    %1059 = vmatpush1.msra.mxu0 %v1023
    %1060 = vmatprep.subr.mxu0 0.0
    %1061 = vmatpush1.msra.mxu0 %v1024
    %1062 = vmatprep.subr.mxu0 0.0
    %1063 = vmatpush1.msra.mxu0 %v1025
    %1064 = vmatprep.subr.mxu0 0.0
    %1065 = vmatpush1.msra.mxu0 %v1026
    %1066 = vmatprep.subr.mxu0 0.0
    %1067 = vmatpush1.msra.mxu0 0.0
    %1068 = vmatprep.subr.mxu0 0.0
    %1069 = vmatpush1.msra.mxu0 0.0
    %1070 = vmatprep.subr.mxu0 0.0
    %1071 = vmatpush1.msra.mxu0 0.0
    %1072 = vmatprep.subr.mxu0 0.0
    %1073 = vmatpush1.msra.mxu0 0.0
    %1074 = vmatprep.subr.mxu0 0.0
    %1075 = vmatpush1.msra.mxu0 0.0
    %1076 = vmatprep.subr.mxu0 0.0
    %1077 = vmatpush1.msra.mxu0 0.0
    %1078 = vmatprep.subr.mxu0 0.0
    %1079 = vmatpush1.msra.mxu0 0.0
    %1080 = vmatprep.subr.mxu0 0.0
    %1081 = vmatpush1.msra.mxu0 0.0
    %1082 = vmatprep.subr.mxu0 0.0
    %1083 = vmatpush1.msra.mxu0 0.0
    %1084 = vmatprep.subr.mxu0 0.0
    %1085 = vmatpush1.msra.mxu0 0.0
    %1086 = vmatprep.subr.mxu0 0.0
    %1087 = vmatpush1.msra.mxu0 0.0
    %1088 = vmatprep.subr.mxu0 0.0
    %1089 = vmatpush1.msra.mxu0 0.0
    %1090 = vmatprep.subr.mxu0 0.0
    %1091 = vmatpush1.msra.mxu0 0.0
    %1092 = vmatprep.subr.mxu0 0.0
    %1093 = vmatpush1.msra.mxu0 0.0
    %1094 = vmatprep.subr.mxu0 0.0
    %1095 = vmatpush1.msra.mxu0 0.0
    %1096 = vmatprep.subr.mxu0 0.0
    %1097 = vmatpush1.msra.mxu0 0.0
    %1098 = vmatprep.mubr.f32.mxu0 0.0
    %1099 = vmatmul.mubr.f32.gmra.mrb[0].mxu0 %v650
    %v1100 = vpop.f32.mrb[0].mxu0
    %v1101 = vadd.f32 %v1032, %v1100
    %v1102 = vpop.f32.mrb[0].mxu0
    %1103 = vmatprep.mubr.f32.mxu0 0.0
    %1104 = vmatmul.mubr.f32.gmra.mrb[0].mxu0 %v651
    %v1105 = vpop.f32.mrb[0].mxu0
    %v1106 = vadd.f32 %v1032, %v1105
    %v1107 = vpop.f32.mrb[0].mxu0
    %1108 = vdwg.mxu0
    %v1109 = vmul.f32 %v828, %v1101
    %v1110 = vmul.f32 %v830, %v1106
    %1111 = vmatprep.subr.mxu0 0.0
    %1112 = vmatpush1.msra.mxu0 %v1010
    %1113 = vmatprep.subr.mxu0 0.0
    %1114 = vmatpush1.msra.mxu0 0.0
    %1115 = vmatprep.subr.mxu0 0.0
    %1116 = vmatpush1.msra.mxu0 0.0
    %1117 = vmatprep.subr.mxu0 0.0
    %1118 = vmatpush1.msra.mxu0 0.0
    %1119 = vmatprep.subr.mxu0 0.0
    %1120 = vmatpush1.msra.mxu0 0.0
    %1121 = vmatprep.subr.mxu0 0.0
    %1122 = vmatpush1.msra.mxu0 0.0
    %1123 = vmatprep.subr.mxu0 0.0
    %1124 = vmatpush1.msra.mxu0 0.0
    %1125 = vmatprep.subr.mxu0 0.0
    %1126 = vmatpush1.msra.mxu0 0.0
    %1127 = vmatprep.subr.mxu0 0.0
    %1128 = vmatpush1.msra.mxu0 0.0
    %1129 = vmatprep.subr.mxu0 0.0
    %1130 = vmatpush1.msra.mxu0 0.0
    %1131 = vmatprep.subr.mxu0 0.0
    %1132 = vmatpush1.msra.mxu0 0.0
    %1133 = vmatprep.subr.mxu0 0.0
    %1134 = vmatpush1.msra.mxu0 0.0
    %1135 = vmatprep.subr.mxu0 0.0
    %1136 = vmatpush1.msra.mxu0 0.0
    %1137 = vmatprep.subr.mxu0 0.0
    %1138 = vmatpush1.msra.mxu0 0.0
    %1139 = vmatprep.subr.mxu0 0.0
    %1140 = vmatpush1.msra.mxu0 0.0
    %1141 = vmatprep.subr.mxu0 0.0
    %1142 = vmatpush1.msra.mxu0 0.0
    %1143 = vmatprep.subr.mxu0 0.0
    %1144 = vmatpush1.msra.mxu0 0.0
    %1145 = vmatprep.subr.mxu0 0.0
    %1146 = vmatpush1.msra.mxu0 0.0
    %1147 = vmatprep.subr.mxu0 0.0
    %1148 = vmatpush1.msra.mxu0 0.0
    %1149 = vmatprep.subr.mxu0 0.0
    %1150 = vmatpush1.msra.mxu0 0.0
    %1151 = vmatprep.subr.mxu0 0.0
    %1152 = vmatpush1.msra.mxu0 0.0
    %1153 = vmatprep.subr.mxu0 0.0
    %1154 = vmatpush1.msra.mxu0 0.0
    %1155 = vmatprep.subr.mxu0 0.0
    %1156 = vmatpush1.msra.mxu0 0.0
    %1157 = vmatprep.subr.mxu0 0.0
    %1158 = vmatpush1.msra.mxu0 0.0
    %1159 = vmatprep.subr.mxu0 0.0
    %1160 = vmatpush1.msra.mxu0 0.0
    %1161 = vmatprep.subr.mxu0 0.0
    %1162 = vmatpush1.msra.mxu0 0.0
    %1163 = vmatprep.subr.mxu0 0.0
    %1164 = vmatpush1.msra.mxu0 0.0
    %1165 = vmatprep.subr.mxu0 0.0
    %1166 = vmatpush1.msra.mxu0 0.0
    %1167 = vmatprep.subr.mxu0 0.0
    %1168 = vmatpush1.msra.mxu0 0.0
    %1169 = vmatprep.subr.mxu0 0.0
    %1170 = vmatpush1.msra.mxu0 0.0
    %1171 = vmatprep.subr.mxu0 0.0
    %1172 = vmatpush1.msra.mxu0 0.0
    %1173 = vmatprep.subr.mxu0 0.0
    %1174 = vmatpush1.msra.mxu0 0.0
    %1175 = vmatprep.mubr.f32.mxu0 0.0
    %1176 = vmatmul.mubr.f32.gmra.mrb[0].mxu0 %v195
    %v1177 = vpop.f32.mrb[0].mxu0
    %v1178 = vadd.f32 %v1109, %v1177
    %v1179 = vpop.f32.mrb[0].mxu0
    %1180 = vmatprep.mubr.f32.mxu0 0.0
    %1181 = vmatmul.mubr.f32.gmra.mrb[0].mxu0 %v198
    %v1182 = vpop.f32.mrb[0].mxu0
    %v1183 = vadd.f32 %v1110, %v1182
    %v1184 = vpop.f32.mrb[0].mxu0
    %1185 = vdwg.mxu0
    %v1186 = vtanh.pop %v1178
    %v1187 = vtanh.pop %v1183
    %v1188 = vsub.f32 1.0, %v1007
    %v1189 = vsub.f32 1.0, %v1009
    %v1190 = vmul.f32 %v1188, %v1186
    %v1191 = vmul.f32 %v1189, %v1187
    %v1192 = vmul.f32 %v1007, %v650
    %v1193 = vmul.f32 %v1009, %v651
    %v1194 = vadd.f32 %v1190, %v1192
    %v1195 = vadd.f32 %v1191, %v1193
    %1196 = vst [vmem:[#allocation10] sm:$0xff] %v1194
    %1197 = vst [vmem:[#allocation10 + $0x8] sm:$0xff] %v1195
    // Predicated region
    $region50: #{tpu_custom_call.1} parent=1 // pred_check
      _
    $region51: #{tpu_custom_call.1} parent=1 // pred_check_branch
      %1199 = sbr.rel (0) target = $region53
    $region52: #{tpu_custom_call.1} parent=1 // pred_region
      %s1201 = ssub.s32 256, 256
      %1202 = vsyncadd [#allocation4], %s1201
      %s1203 = sshll.u32 [#allocation10], 4
      %s1204 = int_to_ptr.vmem [resolvable:$true] %s1203
      %1209 = dma.vmem_to_hbm [thread:$0]  %s1204, 256, %s8, [#allocation4], 128, 128, 8
    $region53: #{tpu_custom_call.1} parent=1 // pred_fallthru
      _
    // Predicated region
    $region54: #{tpu_custom_call.1} parent=1 // pred_check
      _
    $region55: #{tpu_custom_call.1} parent=1 // pred_check_branch
      %1211 = sbr.rel (0) target = $region57
    $region56: #{tpu_custom_call.1} parent=1 // pred_region
      %1212 = dma.done [#allocation4], 256
    $region57: #{tpu_custom_call.1} parent=1 // pred_fallthru
      _
    %1213 = vsyncpa [#allocation3], 1
    %1214 = vsyncpa [#allocation6], 1
    %1215 = vsyncpa [#allocation9], 1
    %1216 = vsyncpa [#allocation4], 1

</llo_original>
